<compile_context>
chip_gen: v7x
topology: tpu7x:2x2x1
jax: 0.10.0
libtpu: 0.0.40
codegen_flags: <defaults>
</compile_context>

<pallas_src>
import functools

import jax
import jax.numpy as jnp
from jax import lax
from jax.experimental import pallas as pl
from jax.experimental.pallas import tpu as pltpu


def _round_up(x, m):
    return ((x + m - 1) // m) * m


def _tpu_vmem_capacity_bytes():
    try:
        return int(pltpu.get_tpu_info().vmem_capacity_bytes)
    except Exception:
        return 64 << 20  # conservative default (v7x per-TensorCore VMEM)


# ----------------------------------------------------------------------------
# CLIP contrastive loss kernel (one grid step == one row block of the batch)
# ----------------------------------------------------------------------------
def _clip_loss_kernel(scale_ref, img_ref, txt_ref, out_ref, *,
                      tile_b, batch, padded, fold_scale):
    i = pl.program_id(0)
    start = pl.multiple_of(i * tile_b, tile_b)
    scale = scale_ref[0, 0]

    # Resident operands stay in their native dtype (bf16 feeds the MXU at native
    # rate; no full-array f32 copy is materialized).
    img_all = img_ref[...]                                   # (B_pad, D)
    txt_all = txt_ref[...]                                   # (B_pad, D)
    img_blk = img_ref[pl.ds(start, tile_b), :]               # (TILE_B, D)
    txt_blk = txt_ref[pl.ds(start, tile_b), :]               # (TILE_B, D)

    # Diagonal term scale * <img_i, txt_i>: O(TILE_B*D) row-wise dot instead of a
    # (TILE_B, B_pad) select + lane reduce. Scale applied exactly once, here.
    diag = scale * jnp.sum(img_blk.astype(jnp.float32) * txt_blk.astype(jnp.float32),
                           axis=1, keepdims=True)            # (TILE_B, 1)

    if fold_scale:
        # f32 features: fold scale into the small row block (exact, O(TILE_B*D)).
        img_mm = img_blk * scale
        txt_mm = txt_blk * scale
    else:
        # bf16 (etc.) features: keep the MXU operands native, scale the f32 logits.
        img_mm = img_blk
        txt_mm = txt_blk

    # Contract dim 1 of both operands -> no explicit .T / XLU transpose.
    dn = (((1,), (1,)), ((), ()))
    logits_i = lax.dot_general(img_mm, txt_all, dn,
                               preferred_element_type=jnp.float32)   # (TILE_B, B_pad)
    logits_t = lax.dot_general(txt_mm, img_all, dn,
                               preferred_element_type=jnp.float32)   # (TILE_B, B_pad)
    if not fold_scale:
        logits_i = logits_i * scale
        logits_t = logits_t * scale

    if padded:
        col_ok = lax.broadcasted_iota(jnp.int32, logits_i.shape, 1) < batch
        neg_inf = jnp.float32(-jnp.inf)

        def row_lse(x):
            xm = jnp.where(col_ok, x, neg_inf)
            m = jnp.max(xm, axis=1, keepdims=True)
            return jnp.log(jnp.sum(jnp.exp(xm - m), axis=1, keepdims=True)) + m
    else:
        # batch % tile == 0: skip the padding selects statically (pure VPU saving).
        def row_lse(x):
            m = jnp.max(x, axis=1, keepdims=True)
            return jnp.log(jnp.sum(jnp.exp(x - m), axis=1, keepdims=True)) + m

    per_row = 0.5 * (row_lse(logits_i) + row_lse(logits_t)) - diag   # (TILE_B, 1)
    if padded:
        row_ok = (lax.broadcasted_iota(jnp.int32, (tile_b, 1), 0) + start) < batch
        per_row = jnp.where(row_ok, per_row, 0.0)
    out_ref[...] = per_row


# ----------------------------------------------------------------------------
# Caption (token-level) cross-entropy kernel (one grid step == TILE_N rows)
# ----------------------------------------------------------------------------
def _caption_loss_kernel(labels_ref, logits_ref, loss_ref, valid_ref, *,
                         pad_id, n_rows, tile_n, has_tail):
    logits = logits_ref[...].astype(jnp.float32)             # (TILE_N, V)
    labels = labels_ref[...]                                 # (TILE_N, 1) int32

    m = jnp.max(logits, axis=1, keepdims=True)
    shifted = logits - m
    # Fused pick: gather the target logit from the shifted tile (no f32 one-hot mul).
    vocab_iota = lax.broadcasted_iota(jnp.int32, logits.shape, 1)
    picked = jnp.sum(jnp.where(vocab_iota == labels, shifted, 0.0),
                     axis=1, keepdims=True)                  # (TILE_N, 1)
    lse = jnp.log(jnp.sum(jnp.exp(shifted), axis=1, keepdims=True))  # (TILE_N, 1)

    valid = labels != pad_id                                 # (TILE_N, 1) bool
    if has_tail:
        # grid = cdiv(N, TILE_N): mask the out-of-bounds rows of the partial last
        # tile (their logits/labels are garbage reads).
        start = pl.program_id(0) * tile_n
        row_ok = (lax.broadcasted_iota(jnp.int32, (tile_n, 1), 0) + start) < n_rows
        valid = jnp.logical_and(valid, row_ok)
    # jnp.where (select), not multiply: garbage/NaN tail rows cannot leak through.
    loss_ref[...] = jnp.where(valid, lse - picked, 0.0)
    valid_ref[...] = valid.astype(jnp.float32)


# ----------------------------------------------------------------------------
# Wrapper
# ----------------------------------------------------------------------------
def coca_loss(image_features, text_features, logits, labels, logit_scale,
              caption_loss_weight=2.0, clip_loss_weight=1.0, pad_id=0,
              clip_tile_b=None, caption_tile_n=None):
    """Returns (clip_loss, caption_loss) matching CoCaLoss.forward (world_size == 1)."""
    vmem_cap = _tpu_vmem_capacity_bytes()
    # ~96 MiB ceiling on 128-MiB-VMEM parts (v5e/v6e), ~48 MiB on v7x (64 MiB).
    vmem_ceiling = (vmem_cap * 3) // 4

    # ------------------------- CLIP contrastive loss -------------------------
    if clip_loss_weight:
        b, d = image_features.shape
        # 256-row LHS blocks fill the 2x256x256 MXU on v6e/v7x; harmless on v5e.
        tile_b = clip_tile_b if clip_tile_b is not None else min(256, _round_up(b, 8))
        assert tile_b % 8 == 0, "clip tile must be a multiple of 8"
        b_pad = _round_up(b, tile_b)

        img, txt = image_features, text_features
        if b_pad != b:
            img = jnp.pad(img, ((0, b_pad - b), (0, 0)))
            txt = jnp.pad(txt, ((0, b_pad - b), (0, 0)))
        scale = jnp.asarray(logit_scale, jnp.float32).reshape(1, 1)
        fold_scale = img.dtype == jnp.float32
        feat_itemsize = jnp.dtype(img.dtype).itemsize

        def _run_clip(single_buffer_resident):
            feat_bufs = 2 if single_buffer_resident else 4
            clip_vmem = (feat_bufs * b_pad * d * feat_itemsize
                         + 6 * tile_b * b_pad * 4 + (2 << 20))
            # Constant index_map -> a single pipeline buffer halves the resident
            # footprint (matters most under v7x's 64 MiB VMEM).
            resident_kwargs = ({"pipeline_mode": pl.Buffered(1)}
                               if single_buffer_resident else {})
            return pl.pallas_call(
                functools.partial(_clip_loss_kernel, tile_b=tile_b, batch=b,
                                  padded=(b_pad != b), fold_scale=fold_scale),
                out_shape=jax.ShapeDtypeStruct((b_pad, 1), jnp.float32),
                grid=(b_pad // tile_b,),
                in_specs=[
                    pl.BlockSpec((1, 1), lambda i: (0, 0),
                                 memory_space=pltpu.MemorySpace.SMEM),
                    pl.BlockSpec((b_pad, d), lambda i: (0, 0), **resident_kwargs),
                    pl.BlockSpec((b_pad, d), lambda i: (0, 0), **resident_kwargs),
                ],
                out_specs=pl.BlockSpec((tile_b, 1), lambda i: (i, 0)),
                compiler_params=pltpu.CompilerParams(
                    dimension_semantics=("parallel",),
                    vmem_limit_bytes=int(min(max(clip_vmem, 16 << 20), vmem_ceiling))),
                cost_estimate=pl.CostEstimate(
                    flops=int(4 * b_pad * b_pad * d + 10 * b_pad * b_pad),
                    transcendentals=int(2 * b_pad * b_pad),
                    bytes_accessed=int(2 * b_pad * d * feat_itemsize + b_pad * 4)),
            )(scale, img, txt)

        try:
            per_row_clip = _run_clip(True)
        except Exception:
            # Compat fallback if pipeline_mode / Buffered(1) is unsupported.
            per_row_clip = _run_clip(False)

        clip_loss = jnp.float32(clip_loss_weight) * (jnp.sum(per_row_clip) / b)
    else:
        clip_loss = jnp.float32(0.0)

    # ----------------------------- caption loss ------------------------------
    bb, t, v = logits.shape
    n = bb * t
    logit_itemsize = jnp.dtype(logits.dtype).itemsize
    row_bytes = v * logit_itemsize
    if caption_tile_n is not None:
        tile_n = caption_tile_n
        assert tile_n % 8 == 0, "caption tile must be a multiple of 8"
    else:
        # Generation-aware per-tile budget; working set per row includes the
        # double-buffered native tile plus the f32 cast / exp intermediates.
        budget = (16 << 20) if vmem_cap >= (96 << 20) else (8 << 20)
        per_row_work = 2 * row_bytes + 3 * v * 4
        tile_n = max(8, min(1024, (budget // max(per_row_work, 1)) // 8 * 8))
        tile_n = min(tile_n, _round_up(n, 8))
    num_tiles = pl.cdiv(n, tile_n)

    # No jnp.pad of the dominant [N, V] tensor: reshape is a view, the partial last
    # tile is masked in-kernel, and out-of-bounds output rows are dropped by Pallas.
    logits_2d = logits.reshape(n, v)
    labels_2d = labels.reshape(n, 1).astype(jnp.int32)

    cap_vmem = tile_n * (2 * row_bytes + 3 * v * 4) + 8 * tile_n * 4 + (2 << 20)
    # TODO(synk): if xprof shows exposed DMA on v7x, set pipeline_mode=pl.Buffered(3)
    # on the logits BlockSpec and shrink tile_n to keep 3 buffers within VMEM.
    loss_rows, valid_rows = pl.pallas_call(
        functools.partial(_caption_loss_kernel, pad_id=pad_id, n_rows=n,
                          tile_n=tile_n, has_tail=(n % tile_n != 0)),
        out_shape=(jax.ShapeDtypeStruct((n, 1), jnp.float32),
                   jax.ShapeDtypeStruct((n, 1), jnp.float32)),
        grid=(num_tiles,),
        in_specs=[
            pl.BlockSpec((tile_n, 1), lambda i: (i, 0)),
            pl.BlockSpec((tile_n, v), lambda i: (i, 0)),
        ],
        out_specs=(pl.BlockSpec((tile_n, 1), lambda i: (i, 0)),
                   pl.BlockSpec((tile_n, 1), lambda i: (i, 0))),
        compiler_params=pltpu.CompilerParams(
            dimension_semantics=("parallel",),
            vmem_limit_bytes=int(min(max(cap_vmem, 16 << 20), vmem_ceiling))),
        cost_estimate=pl.CostEstimate(
            flops=int(6 * n * v),
            transcendentals=int(n * v),
            bytes_accessed=int(n * v * logit_itemsize + 3 * n * 4)),
    )(labels_2d, logits_2d)

    count = jnp.sum(valid_rows)
    # NOTE: PyTorch returns NaN if every target equals ignore_index; we guard instead.
    caption_loss = jnp.float32(caption_loss_weight) * (jnp.sum(loss_rows) /
                                                       jnp.maximum(count, 1.0))
    return clip_loss, caption_loss


# ----------------------------------------------------------------------------
# Pure-JAX reference
# ----------------------------------------------------------------------------
def _reference(image_features, text_features, logits, labels, logit_scale,
               caption_loss_weight, clip_loss_weight, pad_id):
    L = logit_scale * image_features.astype(jnp.float32) @ text_features.astype(jnp.float32).T
    n = L.shape[0]
    lab = jnp.arange(n)
    ce_i = -jnp.mean(jax.nn.log_softmax(L, axis=-1)[lab, lab])
    ce_t = -jnp.mean(jax.nn.log_softmax(L.T, axis=-1)[lab, lab])
    clip = clip_loss_weight * 0.5 * (ce_i + ce_t)

    b, t, v = logits.shape
    lg = logits.reshape(b * t, v).astype(jnp.float32)
    lb = labels.reshape(b * t)
    logp = jax.nn.log_softmax(lg, axis=-1)
    nll = -jnp.take_along_axis(logp, lb[:, None], axis=-1)[:, 0]
    valid = (lb != pad_id).astype(jnp.float32)
    cap = caption_loss_weight * jnp.sum(nll * valid) / jnp.maximum(jnp.sum(valid), 1.0)
    return clip, cap


if __name__ == "__main__":
    key = jax.random.PRNGKey(0)
    k1, k2, k3, k4 = jax.random.split(key, 4)

    B, D = 48, 64        # batch, embed dim
    T, V = 7, 128        # caption sequence length, vocab size (N = B*T = 336)
    pad_id = 0
    caption_loss_weight = 2.0
    clip_loss_weight = 1.0
    logit_scale = jnp.float32(14.285)   # ~ exp(log(1/0.07))

    img = jax.random.normal(k1, (B, D), dtype=jnp.float32)
    txt = jax.random.normal(k2, (B, D), dtype=jnp.float32)
    img = img / jnp.linalg.norm(img, axis=-1, keepdims=True)
    txt = txt / jnp.linalg.norm(txt, axis=-1, keepdims=True)

    cap_logits = jax.random.normal(k3, (B, T, V), dtype=jnp.float32)
    cap_labels = jax.random.randint(k4, (B, T), 0, V, dtype=jnp.int32)
    cap_labels = cap_labels.at[:, -2:].set(pad_id)   # padded positions exercise ignore_index

    ref_clip, ref_cap = _reference(img, txt, cap_logits, cap_labels, logit_scale,
                                   caption_loss_weight, clip_loss_weight, pad_id)

    # Run 1: explicit small tiles -> exercises the padded/masked CLIP path and the
    # partial-tail caption path (N = 336 = 10*32 + 16).
    clip_l, cap_l = coca_loss(img, txt, cap_logits, cap_labels, logit_scale,
                              caption_loss_weight=caption_loss_weight,
                              clip_loss_weight=clip_loss_weight,
                              pad_id=pad_id,
                              clip_tile_b=32, caption_tile_n=32)
    clip_l, cap_l = jax.block_until_ready((clip_l, cap_l))
    assert jnp.allclose(clip_l, ref_clip, rtol=1e-4, atol=1e-4), (clip_l, ref_clip)
    assert jnp.allclose(cap_l, ref_cap, rtol=1e-4, atol=1e-4), (cap_l, ref_cap)

    # Run 2: default tiling -> exercises the unpadded/unmasked static fast paths.
    clip_l2, cap_l2 = coca_loss(img, txt, cap_logits, cap_labels, logit_scale,
                                caption_loss_weight=caption_loss_weight,
                                clip_loss_weight=clip_loss_weight,
                                pad_id=pad_id)
    clip_l2, cap_l2 = jax.block_until_ready((clip_l2, cap_l2))
    assert jnp.allclose(clip_l2, ref_clip, rtol=1e-4, atol=1e-4), (clip_l2, ref_clip)
    assert jnp.allclose(cap_l2, ref_cap, rtol=1e-4, atol=1e-4), (cap_l2, ref_cap)

    print("KERNEL_OK")
</pallas_src>

<mosaic_0001>
module attributes {stable_mosaic.version = 11 : i64} {
  func.func @_clip_loss_kernel(%arg0: i32, %arg1: memref<1x1xf32, #tpu.memory_space<smem>>, %arg2: memref<64x64xf32, #tpu.memory_space<vmem>>, %arg3: memref<64x64xf32, #tpu.memory_space<vmem>>, %arg4: memref<32x1xf32, #tpu.memory_space<vmem>>) attributes {dimension_semantics = [#tpu.dimension_semantics<parallel>], iteration_bounds = array<i64: 2>, scalar_prefetch = 0 : i64, scratch_operands = 0 : i64, tpu.core_type = #tpu.core_type<tc>, window_params = [{transform_indices = @transform_0, window_bounds = array<i64: 1, 1>}, {pipeline_mode = #tpu.pipeline_mode<synchronous>, transform_indices = @transform_1, window_bounds = array<i64: 64, 64>}, {pipeline_mode = #tpu.pipeline_mode<synchronous>, transform_indices = @transform_2, window_bounds = array<i64: 64, 64>}, {transform_indices = @transform_3, window_bounds = array<i64: 32, 1>}]} {
    %c32_i32 = arith.constant 32 : i32
    %0 = arith.muli %arg0, %c32_i32 : i32
    %1 = tpu.assume_multiple %0, 32 : i32
    %c0 = arith.constant 0 : index
    %c0_0 = arith.constant 0 : index
    %2 = memref.load %arg1[%c0, %c0_0] : memref<1x1xf32, #tpu.memory_space<smem>>
    %c0_1 = arith.constant 0 : index
    %c0_2 = arith.constant 0 : index
    %3 = vector.load %arg2[%c0_1, %c0_2] : memref<64x64xf32, #tpu.memory_space<vmem>>, vector<64x64xf32>
    %c0_3 = arith.constant 0 : index
    %c0_4 = arith.constant 0 : index
    %4 = vector.load %arg3[%c0_3, %c0_4] : memref<64x64xf32, #tpu.memory_space<vmem>>, vector<64x64xf32>
    %5 = arith.index_cast %1 : i32 to index
    %c0_5 = arith.constant 0 : index
    %6 = vector.load %arg2[%5, %c0_5] : memref<64x64xf32, #tpu.memory_space<vmem>>, vector<32x64xf32>
    %7 = arith.index_cast %1 : i32 to index
    %c0_6 = arith.constant 0 : index
    %8 = vector.load %arg3[%7, %c0_6] : memref<64x64xf32, #tpu.memory_space<vmem>>, vector<32x64xf32>
    %9 = arith.mulf %6, %8 : vector<32x64xf32>
    %cst = arith.constant dense<0.000000e+00> : vector<32xf32>
    %10 = vector.multi_reduction <add>, %9, %cst [1] : vector<32x64xf32> to vector<32xf32>
    %11 = vector.shape_cast %10 : vector<32xf32> to vector<32x1xf32>
    %12 = vector.broadcast %2 : f32 to vector<32x1xf32>
    %13 = arith.mulf %12, %11 : vector<32x1xf32>
    %14 = vector.broadcast %2 : f32 to vector<32x64xf32>
    %15 = arith.mulf %6, %14 : vector<32x64xf32>
    %16 = vector.broadcast %2 : f32 to vector<32x64xf32>
    %17 = arith.mulf %8, %16 : vector<32x64xf32>
    %cst_7 = arith.constant dense<0.000000e+00> : vector<32x64xf32>
    %18 = tpu.matmul %15, %4, %cst_7 {dimension_numbers = #tpu.dot_dimension_numbers<[1], [1], [0], [0], [0, 0, 1, 0], [], []>} : vector<32x64xf32>, vector<64x64xf32>, vector<32x64xf32> -> vector<32x64xf32>
    %cst_8 = arith.constant dense<0.000000e+00> : vector<32x64xf32>
    %19 = tpu.matmul %17, %3, %cst_8 {dimension_numbers = #tpu.dot_dimension_numbers<[1], [1], [0], [0], [0, 0, 1, 0], [], []>} : vector<32x64xf32>, vector<64x64xf32>, vector<32x64xf32> -> vector<32x64xf32>
    %20 = tpu.iota {dimensions = array<i32: 1>} : vector<32x64xi32>
    %c48_i32 = arith.constant 48 : i32
    %21 = vector.broadcast %c48_i32 : i32 to vector<32x64xi32>
    %22 = arith.cmpi slt, %20, %21 : vector<32x64xi32>
    %cst_9 = arith.constant 0xFF800000 : f32
    %23 = vector.broadcast %cst_9 : f32 to vector<32x64xf32>
    %24 = arith.select %22, %18, %23 : vector<32x64xi1>, vector<32x64xf32>
    %cst_10 = arith.constant dense<0xFF800000> : vector<32xf32>
    %25 = vector.multi_reduction <maximumf>, %24, %cst_10 [1] : vector<32x64xf32> to vector<32xf32>
    %26 = vector.shape_cast %25 : vector<32xf32> to vector<32x1xf32>
    %27 = vector.broadcast %26 : vector<32x1xf32> to vector<32x64xf32>
    %28 = arith.subf %24, %27 : vector<32x64xf32>
    %29 = math.exp %28 : vector<32x64xf32>
    %cst_11 = arith.constant dense<0.000000e+00> : vector<32xf32>
    %30 = vector.multi_reduction <add>, %29, %cst_11 [1] : vector<32x64xf32> to vector<32xf32>
    %31 = vector.shape_cast %30 : vector<32xf32> to vector<32x1xf32>
    %32 = math.log %31 : vector<32x1xf32>
    %33 = arith.addf %32, %26 : vector<32x1xf32>
    %cst_12 = arith.constant 0xFF800000 : f32
    %34 = vector.broadcast %cst_12 : f32 to vector<32x64xf32>
    %35 = arith.select %22, %19, %34 : vector<32x64xi1>, vector<32x64xf32>
    %cst_13 = arith.constant dense<0xFF800000> : vector<32xf32>
    %36 = vector.multi_reduction <maximumf>, %35, %cst_13 [1] : vector<32x64xf32> to vector<32xf32>
    %37 = vector.shape_cast %36 : vector<32xf32> to vector<32x1xf32>
    %38 = vector.broadcast %37 : vector<32x1xf32> to vector<32x64xf32>
    %39 = arith.subf %35, %38 : vector<32x64xf32>
    %40 = math.exp %39 : vector<32x64xf32>
    %cst_14 = arith.constant dense<0.000000e+00> : vector<32xf32>
    %41 = vector.multi_reduction <add>, %40, %cst_14 [1] : vector<32x64xf32> to vector<32xf32>
    %42 = vector.shape_cast %41 : vector<32xf32> to vector<32x1xf32>
    %43 = math.log %42 : vector<32x1xf32>
    %44 = arith.addf %43, %37 : vector<32x1xf32>
    %45 = arith.addf %33, %44 : vector<32x1xf32>
    %cst_15 = arith.constant 5.000000e-01 : f32
    %46 = vector.broadcast %cst_15 : f32 to vector<32x1xf32>
    %47 = arith.mulf %46, %45 : vector<32x1xf32>
    %48 = arith.subf %47, %13 : vector<32x1xf32>
    %49 = tpu.iota {dimensions = array<i32: 0>} : vector<32x1xi32>
    %50 = vector.broadcast %1 : i32 to vector<32x1xi32>
    %51 = arith.addi %49, %50 : vector<32x1xi32>
    %c48_i32_16 = arith.constant 48 : i32
    %52 = vector.broadcast %c48_i32_16 : i32 to vector<32x1xi32>
    %53 = arith.cmpi slt, %51, %52 : vector<32x1xi32>
    %cst_17 = arith.constant 0.000000e+00 : f32
    %54 = vector.broadcast %cst_17 : f32 to vector<32x1xf32>
    %55 = arith.select %53, %48, %54 : vector<32x1xi1>, vector<32x1xf32>
    %c0_18 = arith.constant 0 : index
    %c0_19 = arith.constant 0 : index
    %56 = vector.load %arg4[%c0_18, %c0_19] : memref<32x1xf32, #tpu.memory_space<vmem>>, vector<32x1xf32>
    tpu.vector_store %arg4[%c0_18, %c0_19], %55 {strides = array<i32>} : memref<32x1xf32, #tpu.memory_space<vmem>>, vector<32x1xf32>,
    return
  }
  func.func @transform_0(%arg0: i32) -> (i32, i32) {
    %c0_i32 = arith.constant 0 : i32
    %c0_i32_0 = arith.constant 0 : i32
    %c0_i32_1 = arith.constant 0 : i32
    return %c0_i32, %c0_i32_0 : i32, i32
  }
  func.func @transform_1(%arg0: i32) -> (i32, i32) {
    %c0_i32 = arith.constant 0 : i32
    %c0_i32_0 = arith.constant 0 : i32
    %c0_i32_1 = arith.constant 0 : i32
    return %c0_i32, %c0_i32_0 : i32, i32
  }
  func.func @transform_2(%arg0: i32) -> (i32, i32) {
    %c0_i32 = arith.constant 0 : i32
    %c0_i32_0 = arith.constant 0 : i32
    %c0_i32_1 = arith.constant 0 : i32
    return %c0_i32, %c0_i32_0 : i32, i32
  }
  func.func @transform_3(%arg0: i32) -> (i32, i32) {
    %c0_i32 = arith.constant 0 : i32
    %c0_i32_0 = arith.constant 0 : i32
    return %arg0, %c0_i32 : i32, i32
  }
}

module attributes {stable_mosaic.version = 11 : i64} {
  func.func @_clip_loss_kernel(%arg0: i32, %arg1: memref<1x1xf32, #tpu.memory_space<smem>>, %arg2: memref<64x64xf32, #tpu.memory_space<vmem>>, %arg3: memref<64x64xf32, #tpu.memory_space<vmem>>, %arg4: memref<32x1xf32, #tpu.memory_space<vmem>>) attributes {dimension_semantics = [#tpu.dimension_semantics<parallel>], iteration_bounds = array<i64: 2>, scalar_prefetch = 0 : i64, scratch_operands = 0 : i64, tpu.core_type = #tpu.core_type<tc>, window_params = [{transform_indices = @transform_0, window_bounds = array<i64: 1, 1>}, {pipeline_mode = #tpu.pipeline_mode<synchronous>, transform_indices = @transform_1, window_bounds = array<i64: 64, 64>}, {pipeline_mode = #tpu.pipeline_mode<synchronous>, transform_indices = @transform_2, window_bounds = array<i64: 64, 64>}, {transform_indices = @transform_3, window_bounds = array<i64: 32, 1>}]} {
    %c32_i32 = arith.constant 32 : i32
    %0 = arith.muli %arg0, %c32_i32 : i32
    %1 = tpu.assume_multiple %0, 32 : i32
    %c0 = arith.constant 0 : index
    %c0_0 = arith.constant 0 : index
    %2 = memref.load %arg1[%c0, %c0_0] : memref<1x1xf32, #tpu.memory_space<smem>>
    %c0_1 = arith.constant 0 : index
    %c0_2 = arith.constant 0 : index
    %3 = vector.load %arg2[%c0_1, %c0_2] : memref<64x64xf32, #tpu.memory_space<vmem>>, vector<64x64xf32>
    %c0_3 = arith.constant 0 : index
    %c0_4 = arith.constant 0 : index
    %4 = vector.load %arg3[%c0_3, %c0_4] : memref<64x64xf32, #tpu.memory_space<vmem>>, vector<64x64xf32>
    %5 = arith.index_cast %1 : i32 to index
    %c0_5 = arith.constant 0 : index
    %6 = vector.load %arg2[%5, %c0_5] : memref<64x64xf32, #tpu.memory_space<vmem>>, vector<32x64xf32>
    %7 = arith.index_cast %1 : i32 to index
    %c0_6 = arith.constant 0 : index
    %8 = vector.load %arg3[%7, %c0_6] : memref<64x64xf32, #tpu.memory_space<vmem>>, vector<32x64xf32>
    %9 = arith.mulf %6, %8 : vector<32x64xf32>
    %cst = arith.constant dense<0.000000e+00> : vector<32xf32>
    %10 = vector.multi_reduction <add>, %9, %cst [1] : vector<32x64xf32> to vector<32xf32>
    %11 = vector.shape_cast %10 : vector<32xf32> to vector<32x1xf32>
    %12 = vector.broadcast %2 : f32 to vector<32x1xf32>
    %13 = arith.mulf %12, %11 : vector<32x1xf32>
    %14 = vector.broadcast %2 : f32 to vector<32x64xf32>
    %15 = arith.mulf %6, %14 : vector<32x64xf32>
    %16 = vector.broadcast %2 : f32 to vector<32x64xf32>
    %17 = arith.mulf %8, %16 : vector<32x64xf32>
    %cst_7 = arith.constant dense<0.000000e+00> : vector<32x64xf32>
    %18 = tpu.matmul %15, %4, %cst_7 {dimension_numbers = #tpu.dot_dimension_numbers<[1], [1], [0], [0], [0, 0, 1, 0], [], []>} : vector<32x64xf32>, vector<64x64xf32>, vector<32x64xf32> -> vector<32x64xf32>
    %cst_8 = arith.constant dense<0.000000e+00> : vector<32x64xf32>
    %19 = tpu.matmul %17, %3, %cst_8 {dimension_numbers = #tpu.dot_dimension_numbers<[1], [1], [0], [0], [0, 0, 1, 0], [], []>} : vector<32x64xf32>, vector<64x64xf32>, vector<32x64xf32> -> vector<32x64xf32>
    %20 = tpu.iota {dimensions = array<i32: 1>} : vector<32x64xi32>
    %c48_i32 = arith.constant 48 : i32
    %21 = vector.broadcast %c48_i32 : i32 to vector<32x64xi32>
    %22 = arith.cmpi slt, %20, %21 : vector<32x64xi32>
    %cst_9 = arith.constant 0xFF800000 : f32
    %23 = vector.broadcast %cst_9 : f32 to vector<32x64xf32>
    %24 = arith.select %22, %18, %23 : vector<32x64xi1>, vector<32x64xf32>
    %cst_10 = arith.constant dense<0xFF800000> : vector<32xf32>
    %25 = vector.multi_reduction <maximumf>, %24, %cst_10 [1] : vector<32x64xf32> to vector<32xf32>
    %26 = vector.shape_cast %25 : vector<32xf32> to vector<32x1xf32>
    %27 = vector.broadcast %26 : vector<32x1xf32> to vector<32x64xf32>
    %28 = arith.subf %24, %27 : vector<32x64xf32>
    %29 = math.exp %28 : vector<32x64xf32>
    %cst_11 = arith.constant dense<0.000000e+00> : vector<32xf32>
    %30 = vector.multi_reduction <add>, %29, %cst_11 [1] : vector<32x64xf32> to vector<32xf32>
    %31 = vector.shape_cast %30 : vector<32xf32> to vector<32x1xf32>
    %32 = math.log %31 : vector<32x1xf32>
    %33 = arith.addf %32, %26 : vector<32x1xf32>
    %cst_12 = arith.constant 0xFF800000 : f32
    %34 = vector.broadcast %cst_12 : f32 to vector<32x64xf32>
    %35 = arith.select %22, %19, %34 : vector<32x64xi1>, vector<32x64xf32>
    %cst_13 = arith.constant dense<0xFF800000> : vector<32xf32>
    %36 = vector.multi_reduction <maximumf>, %35, %cst_13 [1] : vector<32x64xf32> to vector<32xf32>
    %37 = vector.shape_cast %36 : vector<32xf32> to vector<32x1xf32>
    %38 = vector.broadcast %37 : vector<32x1xf32> to vector<32x64xf32>
    %39 = arith.subf %35, %38 : vector<32x64xf32>
    %40 = math.exp %39 : vector<32x64xf32>
    %cst_14 = arith.constant dense<0.000000e+00> : vector<32xf32>
    %41 = vector.multi_reduction <add>, %40, %cst_14 [1] : vector<32x64xf32> to vector<32xf32>
    %42 = vector.shape_cast %41 : vector<32xf32> to vector<32x1xf32>
    %43 = math.log %42 : vector<32x1xf32>
    %44 = arith.addf %43, %37 : vector<32x1xf32>
    %45 = arith.addf %33, %44 : vector<32x1xf32>
    %cst_15 = arith.constant 5.000000e-01 : f32
    %46 = vector.broadcast %cst_15 : f32 to vector<32x1xf32>
    %47 = arith.mulf %46, %45 : vector<32x1xf32>
    %48 = arith.subf %47, %13 : vector<32x1xf32>
    %49 = tpu.iota {dimensions = array<i32: 0>} : vector<32x1xi32>
    %50 = vector.broadcast %1 : i32 to vector<32x1xi32>
    %51 = arith.addi %49, %50 : vector<32x1xi32>
    %c48_i32_16 = arith.constant 48 : i32
    %52 = vector.broadcast %c48_i32_16 : i32 to vector<32x1xi32>
    %53 = arith.cmpi slt, %51, %52 : vector<32x1xi32>
    %cst_17 = arith.constant 0.000000e+00 : f32
    %54 = vector.broadcast %cst_17 : f32 to vector<32x1xf32>
    %55 = arith.select %53, %48, %54 : vector<32x1xi1>, vector<32x1xf32>
    %c0_18 = arith.constant 0 : index
    %c0_19 = arith.constant 0 : index
    %56 = vector.load %arg4[%c0_18, %c0_19] : memref<32x1xf32, #tpu.memory_space<vmem>>, vector<32x1xf32>
    tpu.vector_store %arg4[%c0_18, %c0_19], %55 {strides = array<i32>} : memref<32x1xf32, #tpu.memory_space<vmem>>, vector<32x1xf32>,
    return
  }
  func.func @transform_0(%arg0: i32) -> (i32, i32) {
    %c0_i32 = arith.constant 0 : i32
    %c0_i32_0 = arith.constant 0 : i32
    %c0_i32_1 = arith.constant 0 : i32
    return %c0_i32, %c0_i32_0 : i32, i32
  }
  func.func @transform_1(%arg0: i32) -> (i32, i32) {
    %c0_i32 = arith.constant 0 : i32
    %c0_i32_0 = arith.constant 0 : i32
    %c0_i32_1 = arith.constant 0 : i32
    return %c0_i32, %c0_i32_0 : i32, i32
  }
  func.func @transform_2(%arg0: i32) -> (i32, i32) {
    %c0_i32 = arith.constant 0 : i32
    %c0_i32_0 = arith.constant 0 : i32
    %c0_i32_1 = arith.constant 0 : i32
    return %c0_i32, %c0_i32_0 : i32, i32
  }
  func.func @transform_3(%arg0: i32) -> (i32, i32) {
    %c0_i32 = arith.constant 0 : i32
    %c0_i32_0 = arith.constant 0 : i32
    return %arg0, %c0_i32 : i32, i32
  }
}

</mosaic_0001>

<llo_original>
// kernel: tpu_custom_call.1
$region0: #{tpu_custom_call.1}
  #allocation0 [shape = 'u32[]', space=smem, size = 0x4, offset = 0x4, fixed_abs, tag = 'smem constant byte address 0x4 - core index']
  #allocation1 [shape = 'u32[144,128]{1,0:T(1,128)}', space=vmem, size = 0x12000, scoped, tag = 'internal scratch']
  #allocation2 [shape = 'f32[1,1]{1,0:T(1,128)S(6)}', space=smem, size = 0x200, scoped, tag = 'scoped memory for tpu_custom_call.1']
  %s0 = inlined_call_operand.<no memory space> [shape: f32[1,1], index: 0, kind: input, shape index: {}]
  %s1 = inlined_call_operand.hbm [shape: f32[64,64], index: 1, kind: input, shape index: {}]
  %s2 = inlined_call_operand.hbm [shape: f32[64,64], index: 2, kind: input, shape index: {}]
  %s3 = inlined_call_operand.vmem [shape: f32[64,1], index: 3, kind: output, shape index: {}]
  %s4 = sld [smem:[#allocation0]]
  $region53: #{tpu_custom_call.1} parent=0
    _
  %s6 = ssub.s32 1, %s4
  %s7 = scalar_select 0, %s6, %s4
  %8 = sst [smem:[#allocation2]] %s0
  $region1: #{tpu_custom_call.1} parent=0
    #allocation3 [shape = 'u8[32768]{0}', space=vmem, size = 0x8000, scoped, tag = 'input window, operand 1, single buffered']
    #allocation4 [shape = 's32[2]{0}', space=sflag, size = 0x8, scoped, tag = 'scoped memory for tpu_custom_call.1']
    #allocation5 [shape = 'u8[32768]{0}', space=vmem, size = 0x8000, scoped, tag = 'input window, operand 2, single buffered']
    #allocation6 [shape = 's32[1]{0}', space=sflag, size = 0x4, scoped, tag = 'scoped memory for tpu_custom_call.1']
    %9 = vsyncpa [#allocation4], 0
    %10 = vsyncpa [#allocation6], 0
    loop: start=0, step=1, limit=4
    $region2: #{tpu_custom_call.1} parent=1 // loop_pre_header
      _
    $region3: #{tpu_custom_call.1} parent=1 // loop_header
      %s12 = sphi 0, %s16
      %p13 = scmp.ge.s32.totalorder %s12, 4
      %s20 = sphi 0, %s20
      %s22 = sphi 0, %s20
      %s23 = sphi 0, %s22
      %s37 = sphi 0, %s23
      %s41 = sphi 0, %s41
      %s43 = sphi 0, %s41
      %s44 = sphi 0, %s43
      %s58 = sphi 0, %s44
      %s62 = sphi 0, %s62
      %s64 = sphi 0, %s62
      %s65 = sphi 0, %s64
      %s79 = sphi 0, %s65
      %s85 = sphi 0, %s87
      %s88 = sphi 0, %s85
      %s89 = sphi 0, %s88
      %s105 = sphi 0, %s89
    $region4: #{tpu_custom_call.1} parent=1 // loop_header_branch
      %15 = sbr.rel (%p13) target = $region8
    $region5: #{tpu_custom_call.1} parent=1 // loop_body
      %s17 = ssub.s32 %s12, 1
      %s18 = ssub.s32 %s12, 2
      %s19 = sadd.s32 %s12, 1
      %s21 = sadd.s32 %s20, 1
      %p24 = scmp.eq.s32.totalorder %s12, 1
      %p25 = scmp.ne.s32.totalorder %s20, %s22
      %p26 = scmp.eq.s32.totalorder %s12, 0
      %p27 = por %p25, %p26
      %p28 = scmp.ne.s32.totalorder %s20, %s22
      %p29 = scmp.eq.s32.totalorder %s17, 1
      %p30 = por %p28, %p29
      %p31 = scmp.ne.s32.totalorder %s22, %s23
      %p32 = scmp.eq.s32.totalorder %s17, 0
      %p33 = por %p31, %p32
      %p34 = scmp.ne.s32.totalorder %s22, %s23
      %p35 = scmp.eq.s32.totalorder %s18, 1
      %p36 = por %p34, %p35
      %p38 = scmp.ne.s32.totalorder %s23, %s37
      %p39 = scmp.eq.s32.totalorder %s18, 0
      %p40 = por %p38, %p39
      %s42 = sadd.s32 %s41, 1
      %p45 = scmp.eq.s32.totalorder %s12, 1
      %p46 = scmp.ne.s32.totalorder %s41, %s43
      %p47 = scmp.eq.s32.totalorder %s12, 0
      %p48 = por %p46, %p47
      %p49 = scmp.ne.s32.totalorder %s41, %s43
      %p50 = scmp.eq.s32.totalorder %s17, 1
      %p51 = por %p49, %p50
      %p52 = scmp.ne.s32.totalorder %s43, %s44
      %p53 = scmp.eq.s32.totalorder %s17, 0
      %p54 = por %p52, %p53
      %p55 = scmp.ne.s32.totalorder %s43, %s44
      %p56 = scmp.eq.s32.totalorder %s18, 1
      %p57 = por %p55, %p56
      %p59 = scmp.ne.s32.totalorder %s44, %s58
      %p60 = scmp.eq.s32.totalorder %s18, 0
      %p61 = por %p59, %p60
      %s63 = sadd.s32 %s62, 1
      %p66 = scmp.eq.s32.totalorder %s12, 1
      %p67 = scmp.ne.s32.totalorder %s62, %s64
      %p68 = scmp.eq.s32.totalorder %s12, 0
      %p69 = por %p67, %p68
      %p70 = scmp.ne.s32.totalorder %s62, %s64
      %p71 = scmp.eq.s32.totalorder %s17, 1
      %p72 = por %p70, %p71
      %p73 = scmp.ne.s32.totalorder %s64, %s65
      %p74 = scmp.eq.s32.totalorder %s17, 0
      %p75 = por %p73, %p74
      %p76 = scmp.ne.s32.totalorder %s64, %s65
      %p77 = scmp.eq.s32.totalorder %s18, 1
      %p78 = por %p76, %p77
      %p80 = scmp.ne.s32.totalorder %s65, %s79
      %p81 = scmp.eq.s32.totalorder %s18, 0
      %p82 = por %p80, %p81
      %s83 = ssub.s32 %s12, %s19
      %p84 = scmp.eq.s32.totalorder %s83, 0
      %s86 = sadd.s32 %s85, 1
      %s87 = scalar_select %p84, %s85, %s86
      %p90 = pneg %p84
      %p91 = scmp.eq.s32.totalorder %s12, 1
      %p92 = por %p90, %p91
      %p93 = scmp.ne.s32.totalorder %s85, %s88
      %p94 = scmp.eq.s32.totalorder %s12, 0
      %p95 = por %p93, %p94
      %p96 = scmp.ne.s32.totalorder %s85, %s88
      %p97 = scmp.eq.s32.totalorder %s17, 1
      %p98 = por %p96, %p97
      %p99 = scmp.ne.s32.totalorder %s88, %s89
      %p100 = scmp.eq.s32.totalorder %s17, 0
      %p101 = por %p99, %p100
      %p102 = scmp.ne.s32.totalorder %s88, %s89
      %p103 = scmp.eq.s32.totalorder %s18, 1
      %p104 = por %p102, %p103
      %p106 = scmp.ne.s32.totalorder %s89, %s105
      %p107 = scmp.eq.s32.totalorder %s18, 0
      %p108 = por %p106, %p107
      %p109 = scmp.le.s32.totalorder 1, %s12
      %p110 = scmp.lt.s32.totalorder %s12, 3
      %p111 = pnand %p109, %p110
      %p112 = pneg %p111
      // Predicated region
      $region9: #{tpu_custom_call.1} parent=5 // pred_check
        _
      $region10: #{tpu_custom_call.1} parent=5 // pred_check_branch
        %114 = sbr.rel (%p111) target = $region12
      $region11: #{tpu_custom_call.1} parent=5 // pred_region
        %s115 = ssub.s32 %s12, 1
        // Predicated region
        $region13: #{tpu_custom_call.1} parent=11 // pred_check
          %p116 = pneg %p33
        $region14: #{tpu_custom_call.1} parent=11 // pred_check_branch
          %118 = sbr.rel (%p116) target = $region16
        $region15: #{tpu_custom_call.1} parent=11 // pred_region
          _
        $region16: #{tpu_custom_call.1} parent=11 // pred_fallthru
          _
        // Predicated region
        $region17: #{tpu_custom_call.1} parent=11 // pred_check
          %p119 = pneg %p54
        $region18: #{tpu_custom_call.1} parent=11 // pred_check_branch
          %121 = sbr.rel (%p119) target = $region20
        $region19: #{tpu_custom_call.1} parent=11 // pred_region
          %s123 = ssub.s32 1024, 1024
          %124 = vsyncadd [#allocation4], %s123
          %s125 = sshll.u32 [#allocation3], 4
          %s126 = int_to_ptr.vmem [resolvable:$true] %s125
          %131 = dma.hbm_to_vmem [thread:$0]  %s1, 1024, %s126, [#allocation4], 128, 128, 8
        $region20: #{tpu_custom_call.1} parent=11 // pred_fallthru
          _
        // Predicated region
        $region21: #{tpu_custom_call.1} parent=11 // pred_check
          %p132 = pneg %p75
        $region22: #{tpu_custom_call.1} parent=11 // pred_check_branch
          %134 = sbr.rel (%p132) target = $region24
        $region23: #{tpu_custom_call.1} parent=11 // pred_region
          %s136 = ssub.s32 1024, 1024
          %137 = vsyncadd [#allocation6], %s136
          %s138 = sshll.u32 [#allocation5], 4
          %s139 = int_to_ptr.vmem [resolvable:$true] %s138
          %144 = dma.hbm_to_vmem [thread:$0]  %s2, 1024, %s139, [#allocation6], 128, 128, 8
        $region24: #{tpu_custom_call.1} parent=11 // pred_fallthru
          _
      $region12: #{tpu_custom_call.1} parent=5 // pred_fallthru
        _
      %p145 = scmp.lt.s32.totalorder %s12, 2
      // Predicated region
      $region25: #{tpu_custom_call.1} parent=5 // pred_check
        %p146 = pneg %p145
      $region26: #{tpu_custom_call.1} parent=5 // pred_check_branch
        %148 = sbr.rel (%p146) target = $region28
      $region27: #{tpu_custom_call.1} parent=5 // pred_region
        _
      $region28: #{tpu_custom_call.1} parent=5 // pred_fallthru
        _
      %p149 = scmp.le.s32.totalorder 1, %s12
      %p150 = scmp.lt.s32.totalorder %s12, 3
      %p151 = pnand %p149, %p150
      %p152 = pneg %p151
      // Predicated region
      $region29: #{tpu_custom_call.1} parent=5 // pred_check
        _
      $region30: #{tpu_custom_call.1} parent=5 // pred_check_branch
        %154 = sbr.rel (%p151) target = $region32
      $region31: #{tpu_custom_call.1} parent=5 // pred_region
        %s155 = ssub.s32 %s12, 1
        // Predicated region
        $region33: #{tpu_custom_call.1} parent=31 // pred_check
          %p156 = pneg %p54
        $region34: #{tpu_custom_call.1} parent=31 // pred_check_branch
          %158 = sbr.rel (%p156) target = $region36
        $region35: #{tpu_custom_call.1} parent=31 // pred_region
          %159 = dma.done [#allocation4], 1024
        $region36: #{tpu_custom_call.1} parent=31 // pred_fallthru
          _
        // Predicated region
        $region37: #{tpu_custom_call.1} parent=31 // pred_check
          %p160 = pneg %p75
        $region38: #{tpu_custom_call.1} parent=31 // pred_check_branch
          %162 = sbr.rel (%p160) target = $region40
        $region39: #{tpu_custom_call.1} parent=31 // pred_region
          %163 = dma.done [#allocation6], 1024
        $region40: #{tpu_custom_call.1} parent=31 // pred_fallthru
          _
        %p164 = pneg %p33
        %p165 = pneg %p30
        %p166 = pneg %p54
        %p167 = pneg %p51
        %p168 = pneg %p75
        %p169 = pneg %p72
        %p170 = pneg %p101
        %p171 = pneg %p98
        %s172 = smul.u32 4, %s17
        %p173 = scmp.lt.s32.totalorder %s172, 7
        %s174 = scalar_select %p173, %s172, 7
        %s175 = smul.addr %s174, 8
        %s176 = scalar_lea.vmem %s3, %s175
        %s177 = smul.u32 4, %s17
        %p178 = scmp.lt.s32.totalorder %s177, 7
        %s179 = scalar_select %p178, %s177, 7
        %s180 = smul.addr %s179, 8
        %s181 = scalar_lea.vmem %s3, %s180
        %s182 = smul.u32 4, %s17
        %s183 = smul.u32 %s17, 32
        %s184 = sld [smem:[#allocation2]]
        %v185 = vld [vmem:[#allocation3] sm:$0xff]
        %v186 = vld [vmem:[#allocation3 + $0x8] sm:$0xff]
        %v187 = vld [vmem:[#allocation3 + $0x10] sm:$0xff]
        %v188 = vld [vmem:[#allocation3 + $0x18] sm:$0xff]
        %v189 = vld [vmem:[#allocation3 + $0x20] sm:$0xff]
        %v190 = vld [vmem:[#allocation3 + $0x28] sm:$0xff]
        %v191 = vld [vmem:[#allocation3 + $0x30] sm:$0xff]
        %v192 = vld [vmem:[#allocation3 + $0x38] sm:$0xff]
        %v193 = vld [vmem:[#allocation5] sm:$0xff]
        %v194 = vld [vmem:[#allocation5 + $0x8] sm:$0xff]
        %v195 = vld [vmem:[#allocation5 + $0x10] sm:$0xff]
        %v196 = vld [vmem:[#allocation5 + $0x18] sm:$0xff]
        %v197 = vld [vmem:[#allocation5 + $0x20] sm:$0xff]
        %v198 = vld [vmem:[#allocation5 + $0x28] sm:$0xff]
        %v199 = vld [vmem:[#allocation5 + $0x30] sm:$0xff]
        %v200 = vld [vmem:[#allocation5 + $0x38] sm:$0xff]
        %s201 = scalar_lea.vmem [#allocation3], %s183
        %v202 = vld [vmem:[%s201] sm:$0xff]
        %v203 = vld [vmem:[%s201 + $0x8] sm:$0xff]
        %v204 = vld [vmem:[%s201 + $0x10] sm:$0xff]
        %v205 = vld [vmem:[%s201 + $0x18] sm:$0xff]
        %s206 = scalar_lea.vmem [#allocation5], %s183
        %v207 = vld [vmem:[%s206] sm:$0xff]
        %v208 = vld [vmem:[%s206 + $0x8] sm:$0xff]
        %v209 = vld [vmem:[%s206 + $0x10] sm:$0xff]
        %v210 = vld [vmem:[%s206 + $0x18] sm:$0xff]
        %v211 = vmul.f32 %v202, %v207
        %v212 = vmul.f32 %v203, %v208
        %v213 = vmul.f32 %v204, %v209
        %v214 = vmul.f32 %v205, %v210
        %vm215 = vcmask 523264
        %v216 = vsel %vm215, %v211, 0.0
        %217 = vadd.xlane.f32.xlu0 %v216
        %v218 = vpop.xlane.xlu0 %217
        %v219 = vsel %vm215, %v212, 0.0
        %220 = vadd.xlane.f32.xlu0 %v219
        %v221 = vpop.xlane.xlu0 %220
        %v222 = vsel %vm215, %v213, 0.0
        %223 = vadd.xlane.f32.xlu0 %v222
        %v224 = vpop.xlane.xlu0 %223
        %v225 = vsel %vm215, %v214, 0.0
        %226 = vadd.xlane.f32.xlu0 %v225
        %v227 = vpop.xlane.xlu0 %226
        %v228 = vstv %s184
        %v229 = vmul.f32 %v228, %v218
        %v230 = vmul.f32 %v228, %v221
        %v231 = vmul.f32 %v228, %v224
        %v232 = vmul.f32 %v228, %v227
        %v233 = vmul.f32 %v202, %v228
        %v234 = vmul.f32 %v203, %v228
        %v235 = vmul.f32 %v204, %v228
        %v236 = vmul.f32 %v205, %v228
        %v237 = vmul.f32 %v207, %v228
        %v238 = vmul.f32 %v208, %v228
        %v239 = vmul.f32 %v209, %v228
        %v240 = vmul.f32 %v210, %v228
        %v242 = vsel %vm215, %v233, 0
        %v245 = vsel %vm215, %v234, 0
        %v248 = vsel %vm215, %v235, 0
        %v251 = vsel %vm215, %v236, 0
        %v254 = vsel %vm215, %v193, 0
        %v257 = vsel %vm215, %v194, 0
        %v260 = vsel %vm215, %v195, 0
        %v263 = vsel %vm215, %v196, 0
        %v266 = vsel %vm215, %v197, 0
        %v269 = vsel %vm215, %v198, 0
        %v272 = vsel %vm215, %v199, 0
        %v275 = vsel %vm215, %v200, 0
        %277 = vmatprep.subr.mxu0 0.0
        %278 = vmatpush1.xpose.msra.mxu0 %v254
        %279 = vmatprep.subr.mxu0 0.0
        %280 = vmatpush1.xpose.msra.mxu0 %v257
        %281 = vmatprep.subr.mxu0 0.0
        %282 = vmatpush1.xpose.msra.mxu0 %v260
        %283 = vmatprep.subr.mxu0 0.0
        %284 = vmatpush1.xpose.msra.mxu0 %v263
        %285 = vmatprep.subr.mxu0 0.0
        %286 = vmatpush1.xpose.msra.mxu0 %v266
        %287 = vmatprep.subr.mxu0 0.0
        %288 = vmatpush1.xpose.msra.mxu0 %v269
        %289 = vmatprep.subr.mxu0 0.0
        %290 = vmatpush1.xpose.msra.mxu0 %v272
        %291 = vmatprep.subr.mxu0 0.0
        %292 = vmatpush1.xpose.msra.mxu0 %v275
        %293 = vmatprep.subr.mxu0 0.0
        %294 = vmatpush1.xpose.msra.mxu0 0.0
        %295 = vmatprep.subr.mxu0 0.0
        %296 = vmatpush1.xpose.msra.mxu0 0.0
        %297 = vmatprep.subr.mxu0 0.0
        %298 = vmatpush1.xpose.msra.mxu0 0.0
        %299 = vmatprep.subr.mxu0 0.0
        %300 = vmatpush1.xpose.msra.mxu0 0.0
        %301 = vmatprep.subr.mxu0 0.0
        %302 = vmatpush1.xpose.msra.mxu0 0.0
        %303 = vmatprep.subr.mxu0 0.0
        %304 = vmatpush1.xpose.msra.mxu0 0.0
        %305 = vmatprep.subr.mxu0 0.0
        %306 = vmatpush1.xpose.msra.mxu0 0.0
        %307 = vmatprep.subr.mxu0 0.0
        %308 = vmatpush1.xpose.msra.mxu0 0.0
        %309 = vmatprep.subr.mxu0 0.0
        %310 = vmatpush1.xpose.msra.mxu0 0.0
        %311 = vmatprep.subr.mxu0 0.0
        %312 = vmatpush1.xpose.msra.mxu0 0.0
        %313 = vmatprep.subr.mxu0 0.0
        %314 = vmatpush1.xpose.msra.mxu0 0.0
        %315 = vmatprep.subr.mxu0 0.0
        %316 = vmatpush1.xpose.msra.mxu0 0.0
        %317 = vmatprep.subr.mxu0 0.0
        %318 = vmatpush1.xpose.msra.mxu0 0.0
        %319 = vmatprep.subr.mxu0 0.0
        %320 = vmatpush1.xpose.msra.mxu0 0.0
        %321 = vmatprep.subr.mxu0 0.0
        %322 = vmatpush1.xpose.msra.mxu0 0.0
        %323 = vmatprep.subr.mxu0 0.0
        %324 = vmatpush1.xpose.msra.mxu0 0.0
        %325 = vmatprep.subr.mxu0 0.0
        %326 = vmatpush1.xpose.msra.mxu0 0.0
        %327 = vmatprep.subr.mxu0 0.0
        %328 = vmatpush1.xpose.msra.mxu0 0.0
        %329 = vmatprep.subr.mxu0 0.0
        %330 = vmatpush1.xpose.msra.mxu0 0.0
        %331 = vmatprep.subr.mxu0 0.0
        %332 = vmatpush1.xpose.msra.mxu0 0.0
        %333 = vmatprep.subr.mxu0 0.0
        %334 = vmatpush1.xpose.msra.mxu0 0.0
        %335 = vmatprep.subr.mxu0 0.0
        %336 = vmatpush1.xpose.msra.mxu0 0.0
        %337 = vmatprep.subr.mxu0 0.0
        %338 = vmatpush1.xpose.msra.mxu0 0.0
        %339 = vmatprep.subr.mxu0 0.0
        %340 = vmatpush1.xpose.msra.mxu0 0.0
        %341 = vmatprep.mubr.f32.mxu0 0.0
        %342 = vmatmul.mubr.f32.gmra.mrb[0].mxu0 %v242
        %v343 = vpop.f32.mrb[0].mxu0
        %v344 = vadd.f32 0.0, %v343
        %v345 = vpop.f32.mrb[0].mxu0
        %346 = vmatprep.mubr.f32.mxu0 0.0
        %347 = vmatmul.mubr.f32.gmra.mrb[0].mxu0 %v245
        %v348 = vpop.f32.mrb[0].mxu0
        %v349 = vadd.f32 0.0, %v348
        %v350 = vpop.f32.mrb[0].mxu0
        %351 = vmatprep.mubr.f32.mxu0 0.0
        %352 = vmatmul.mubr.f32.gmra.mrb[0].mxu0 %v248
        %v353 = vpop.f32.mrb[0].mxu0
        %v354 = vadd.f32 0.0, %v353
        %v355 = vpop.f32.mrb[0].mxu0
        %356 = vmatprep.mubr.f32.mxu0 0.0
        %357 = vmatmul.mubr.f32.gmra.mrb[0].mxu0 %v251
        %v358 = vpop.f32.mrb[0].mxu0
        %v359 = vadd.f32 0.0, %v358
        %v360 = vpop.f32.mrb[0].mxu0
        %361 = vdwg.mxu0
        %v363 = vsel %vm215, %v237, 0
        %v366 = vsel %vm215, %v238, 0
        %v369 = vsel %vm215, %v239, 0
        %v372 = vsel %vm215, %v240, 0
        %v375 = vsel %vm215, %v185, 0
        %v378 = vsel %vm215, %v186, 0
        %v381 = vsel %vm215, %v187, 0
        %v384 = vsel %vm215, %v188, 0
        %v387 = vsel %vm215, %v189, 0
        %v390 = vsel %vm215, %v190, 0
        %v393 = vsel %vm215, %v191, 0
        %v396 = vsel %vm215, %v192, 0
        %398 = vmatprep.subr.mxu0 0.0
        %399 = vmatpush1.xpose.msra.mxu0 %v375
        %400 = vmatprep.subr.mxu0 0.0
        %401 = vmatpush1.xpose.msra.mxu0 %v378
        %402 = vmatprep.subr.mxu0 0.0
        %403 = vmatpush1.xpose.msra.mxu0 %v381
        %404 = vmatprep.subr.mxu0 0.0
        %405 = vmatpush1.xpose.msra.mxu0 %v384
        %406 = vmatprep.subr.mxu0 0.0
        %407 = vmatpush1.xpose.msra.mxu0 %v387
        %408 = vmatprep.subr.mxu0 0.0
        %409 = vmatpush1.xpose.msra.mxu0 %v390
        %410 = vmatprep.subr.mxu0 0.0
        %411 = vmatpush1.xpose.msra.mxu0 %v393
        %412 = vmatprep.subr.mxu0 0.0
        %413 = vmatpush1.xpose.msra.mxu0 %v396
        %414 = vmatprep.subr.mxu0 0.0
        %415 = vmatpush1.xpose.msra.mxu0 0.0
        %416 = vmatprep.subr.mxu0 0.0
        %417 = vmatpush1.xpose.msra.mxu0 0.0
        %418 = vmatprep.subr.mxu0 0.0
        %419 = vmatpush1.xpose.msra.mxu0 0.0
        %420 = vmatprep.subr.mxu0 0.0
        %421 = vmatpush1.xpose.msra.mxu0 0.0
        %422 = vmatprep.subr.mxu0 0.0
        %423 = vmatpush1.xpose.msra.mxu0 0.0
        %424 = vmatprep.subr.mxu0 0.0
        %425 = vmatpush1.xpose.msra.mxu0 0.0
        %426 = vmatprep.subr.mxu0 0.0
        %427 = vmatpush1.xpose.msra.mxu0 0.0
        %428 = vmatprep.subr.mxu0 0.0
        %429 = vmatpush1.xpose.msra.mxu0 0.0
        %430 = vmatprep.subr.mxu0 0.0
        %431 = vmatpush1.xpose.msra.mxu0 0.0
        %432 = vmatprep.subr.mxu0 0.0
        %433 = vmatpush1.xpose.msra.mxu0 0.0
        %434 = vmatprep.subr.mxu0 0.0
        %435 = vmatpush1.xpose.msra.mxu0 0.0
        %436 = vmatprep.subr.mxu0 0.0
        %437 = vmatpush1.xpose.msra.mxu0 0.0
        %438 = vmatprep.subr.mxu0 0.0
        %439 = vmatpush1.xpose.msra.mxu0 0.0
        %440 = vmatprep.subr.mxu0 0.0
        %441 = vmatpush1.xpose.msra.mxu0 0.0
        %442 = vmatprep.subr.mxu0 0.0
        %443 = vmatpush1.xpose.msra.mxu0 0.0
        %444 = vmatprep.subr.mxu0 0.0
        %445 = vmatpush1.xpose.msra.mxu0 0.0
        %446 = vmatprep.subr.mxu0 0.0
        %447 = vmatpush1.xpose.msra.mxu0 0.0
        %448 = vmatprep.subr.mxu0 0.0
        %449 = vmatpush1.xpose.msra.mxu0 0.0
        %450 = vmatprep.subr.mxu0 0.0
        %451 = vmatpush1.xpose.msra.mxu0 0.0
        %452 = vmatprep.subr.mxu0 0.0
        %453 = vmatpush1.xpose.msra.mxu0 0.0
        %454 = vmatprep.subr.mxu0 0.0
        %455 = vmatpush1.xpose.msra.mxu0 0.0
        %456 = vmatprep.subr.mxu0 0.0
        %457 = vmatpush1.xpose.msra.mxu0 0.0
        %458 = vmatprep.subr.mxu0 0.0
        %459 = vmatpush1.xpose.msra.mxu0 0.0
        %460 = vmatprep.subr.mxu0 0.0
        %461 = vmatpush1.xpose.msra.mxu0 0.0
        %462 = vmatprep.mubr.f32.mxu0 0.0
        %463 = vmatmul.mubr.f32.gmra.mrb[0].mxu0 %v363
        %v464 = vpop.f32.mrb[0].mxu0
        %v465 = vadd.f32 0.0, %v464
        %v466 = vpop.f32.mrb[0].mxu0
        %467 = vmatprep.mubr.f32.mxu0 0.0
        %468 = vmatmul.mubr.f32.gmra.mrb[0].mxu0 %v366
        %v469 = vpop.f32.mrb[0].mxu0
        %v470 = vadd.f32 0.0, %v469
        %v471 = vpop.f32.mrb[0].mxu0
        %472 = vmatprep.mubr.f32.mxu0 0.0
        %473 = vmatmul.mubr.f32.gmra.mrb[0].mxu0 %v369
        %v474 = vpop.f32.mrb[0].mxu0
        %v475 = vadd.f32 0.0, %v474
        %v476 = vpop.f32.mrb[0].mxu0
        %477 = vmatprep.mubr.f32.mxu0 0.0
        %478 = vmatmul.mubr.f32.gmra.mrb[0].mxu0 %v372
        %v479 = vpop.f32.mrb[0].mxu0
        %v480 = vadd.f32 0.0, %v479
        %v481 = vpop.f32.mrb[0].mxu0
        %482 = vdwg.mxu0
        %v483 = vlaneseq
        %v484 = vand.u32 %v483, 127
        %vm485 = vcmp.lt.s32.totalorder %v484, 48
        %v486 = vsel %vm485, %v344, -inf
        %v487 = vsel %vm485, %v349, -inf
        %v488 = vsel %vm485, %v354, -inf
        %v489 = vsel %vm485, %v359, -inf
        %v490 = vsel %vm215, %v486, -inf
        %491 = vmax.xlane.f32.xlu0 %v490
        %v492 = vpop.xlane.xlu0 %491
        %v493 = vsel %vm215, %v487, -inf
        %494 = vmax.xlane.f32.xlu0 %v493
        %v495 = vpop.xlane.xlu0 %494
        %v496 = vsel %vm215, %v488, -inf
        %497 = vmax.xlane.f32.xlu0 %v496
        %v498 = vpop.xlane.xlu0 %497
        %v499 = vsel %vm215, %v489, -inf
        %500 = vmax.xlane.f32.xlu0 %v499
        %v501 = vpop.xlane.xlu0 %500
        %v502 = vsub.f32 %v486, %v492
        %v503 = vsub.f32 %v487, %v495
        %v504 = vsub.f32 %v488, %v498
        %v505 = vsub.f32 %v489, %v501
        %v506 = vmul.f32 %v502, 1.442695
        %v507 = vpow.pop %v506
        %v508 = vmul.f32 %v503, 1.442695
        %v509 = vpow.pop %v508
        %v510 = vmul.f32 %v504, 1.442695
        %v511 = vpow.pop %v510
        %v512 = vmul.f32 %v505, 1.442695
        %v513 = vpow.pop %v512
        %v514 = vsel %vm215, %v507, 0.0
        %515 = vadd.xlane.f32.xlu0 %v514
        %v516 = vpop.xlane.xlu0 %515
        %v517 = vsel %vm215, %v509, 0.0
        %518 = vadd.xlane.f32.xlu0 %v517
        %v519 = vpop.xlane.xlu0 %518
        %v520 = vsel %vm215, %v511, 0.0
        %521 = vadd.xlane.f32.xlu0 %v520
        %v522 = vpop.xlane.xlu0 %521
        %v523 = vsel %vm215, %v513, 0.0
        %524 = vadd.xlane.f32.xlu0 %v523
        %v525 = vpop.xlane.xlu0 %524
        %v526 = vlog2.pop %v516
        %v527 = vmul.f32 %v526, 0.6931472
        %v528 = vlog2.pop %v519
        %v529 = vmul.f32 %v528, 0.6931472
        %v530 = vlog2.pop %v522
        %v531 = vmul.f32 %v530, 0.6931472
        %v532 = vlog2.pop %v525
        %v533 = vmul.f32 %v532, 0.6931472
        %v534 = vadd.f32 %v527, %v492
        %v535 = vadd.f32 %v529, %v495
        %v536 = vadd.f32 %v531, %v498
        %v537 = vadd.f32 %v533, %v501
        %v538 = vsel %vm485, %v465, -inf
        %v539 = vsel %vm485, %v470, -inf
        %v540 = vsel %vm485, %v475, -inf
        %v541 = vsel %vm485, %v480, -inf
        %v542 = vsel %vm215, %v538, -inf
        %543 = vmax.xlane.f32.xlu0 %v542
        %v544 = vpop.xlane.xlu0 %543
        %v545 = vsel %vm215, %v539, -inf
        %546 = vmax.xlane.f32.xlu0 %v545
        %v547 = vpop.xlane.xlu0 %546
        %v548 = vsel %vm215, %v540, -inf
        %549 = vmax.xlane.f32.xlu0 %v548
        %v550 = vpop.xlane.xlu0 %549
        %v551 = vsel %vm215, %v541, -inf
        %552 = vmax.xlane.f32.xlu0 %v551
        %v553 = vpop.xlane.xlu0 %552
        %v554 = vsub.f32 %v538, %v544
        %v555 = vsub.f32 %v539, %v547
        %v556 = vsub.f32 %v540, %v550
        %v557 = vsub.f32 %v541, %v553
        %v558 = vmul.f32 %v554, 1.442695
        %v559 = vpow.pop %v558
        %v560 = vmul.f32 %v555, 1.442695
        %v561 = vpow.pop %v560
        %v562 = vmul.f32 %v556, 1.442695
        %v563 = vpow.pop %v562
        %v564 = vmul.f32 %v557, 1.442695
        %v565 = vpow.pop %v564
        %v566 = vsel %vm215, %v559, 0.0
        %567 = vadd.xlane.f32.xlu0 %v566
        %v568 = vpop.xlane.xlu0 %567
        %v569 = vsel %vm215, %v561, 0.0
        %570 = vadd.xlane.f32.xlu0 %v569
        %v571 = vpop.xlane.xlu0 %570
        %v572 = vsel %vm215, %v563, 0.0
        %573 = vadd.xlane.f32.xlu0 %v572
        %v574 = vpop.xlane.xlu0 %573
        %v575 = vsel %vm215, %v565, 0.0
        %576 = vadd.xlane.f32.xlu0 %v575
        %v577 = vpop.xlane.xlu0 %576
        %v578 = vlog2.pop %v568
        %v579 = vmul.f32 %v578, 0.6931472
        %v580 = vlog2.pop %v571
        %v581 = vmul.f32 %v580, 0.6931472
        %v582 = vlog2.pop %v574
        %v583 = vmul.f32 %v582, 0.6931472
        %v584 = vlog2.pop %v577
        %v585 = vmul.f32 %v584, 0.6931472
        %v586 = vadd.f32 %v579, %v544
        %v587 = vadd.f32 %v581, %v547
        %v588 = vadd.f32 %v583, %v550
        %v589 = vadd.f32 %v585, %v553
        %v590 = vadd.f32 %v534, %v586
        %v591 = vadd.f32 %v535, %v587
        %v592 = vadd.f32 %v536, %v588
        %v593 = vadd.f32 %v537, %v589
        %v594 = vmul.f32 %v590, 0.5
        %v595 = vmul.f32 %v591, 0.5
        %v596 = vmul.f32 %v592, 0.5
        %v597 = vmul.f32 %v593, 0.5
        %v598 = vsub.f32 %v594, %v229
        %v599 = vsub.f32 %v595, %v230
        %v600 = vsub.f32 %v596, %v231
        %v601 = vsub.f32 %v597, %v232
        %v602 = vlaneseq
        %v603 = vshrl.u32 %v602, 7
        %v604 = vadd.s32 %v603, 8
        %v605 = vadd.s32 %v603, 16
        %v606 = vadd.s32 %v603, 24
        %v607 = vstv %s183
        %v608 = vadd.s32 %v603, %v607
        %v609 = vadd.s32 %v604, %v607
        %v610 = vadd.s32 %v605, %v607
        %v611 = vadd.s32 %v606, %v607
        %vm612 = vcmp.lt.s32.totalorder %v608, 48
        %vm613 = vcmp.lt.s32.totalorder %v609, 48
        %vm614 = vcmp.lt.s32.totalorder %v610, 48
        %vm615 = vcmp.lt.s32.totalorder %v611, 48
        %v616 = vsel %vm612, %v598, 0.0
        %v617 = vsel %vm613, %v599, 0.0
        %v618 = vsel %vm614, %v600, 0.0
        %v619 = vsel %vm615, %v601, 0.0
        %vm620 = vcmask 7168
        %621 = vst.msk [vmem:[%s181] sm:$0xff] %vm620, %v616
        %622 = vst.msk [vmem:[%s181 + $0x8] sm:$0xff] %vm620, %v617
        %623 = vst.msk [vmem:[%s181 + $0x10] sm:$0xff] %vm620, %v618
        %624 = vst.msk [vmem:[%s181 + $0x18] sm:$0xff] %vm620, %v619
        %s625 = smul.u32 4, %s17
        %p626 = scmp.lt.s32.totalorder %s625, 7
        %s627 = scalar_select %p626, %s625, 7
        %s628 = smul.addr %s627, 8
        %s629 = scalar_lea.vmem %s3, %s628
        // Predicated region
        $region41: #{tpu_custom_call.1} parent=31 // pred_check
          %p630 = pneg %p98
        $region42: #{tpu_custom_call.1} parent=31 // pred_check_branch
          %632 = sbr.rel (%p630) target = $region44
        $region43: #{tpu_custom_call.1} parent=31 // pred_region
          %s633 = smul.u32 4, %s17
        $region44: #{tpu_custom_call.1} parent=31 // pred_fallthru
          _
      $region32: #{tpu_custom_call.1} parent=5 // pred_fallthru
        _
      %p634 = scmp.le.s32.totalorder 2, %s12
      // Predicated region
      $region45: #{tpu_custom_call.1} parent=5 // pred_check
        %p635 = pneg %p634
      $region46: #{tpu_custom_call.1} parent=5 // pred_check_branch
        %637 = sbr.rel (%p635) target = $region48
      $region47: #{tpu_custom_call.1} parent=5 // pred_region
        %s638 = ssub.s32 %s12, 2
        // Predicated region
        $region49: #{tpu_custom_call.1} parent=47 // pred_check
          %p639 = pneg %p104
        $region50: #{tpu_custom_call.1} parent=47 // pred_check_branch
          %641 = sbr.rel (%p639) target = $region52
        $region51: #{tpu_custom_call.1} parent=47 // pred_region
          %s642 = smul.u32 4, %s18
          %p643 = scmp.lt.s32.totalorder %s642, 7
          %s644 = scalar_select %p643, %s642, 7
          %s645 = smul.addr %s644, 8
          %s646 = scalar_lea.vmem %s3, %s645
        $region52: #{tpu_custom_call.1} parent=47 // pred_fallthru
          _
      $region48: #{tpu_custom_call.1} parent=5 // pred_fallthru
        _
    $region6: #{tpu_custom_call.1} parent=1 // loop_footer
      %s16 = sadd.s32 1, %s12
    $region7: #{tpu_custom_call.1} parent=1 // loop_footer_branch
      %11 = sbr.rel target = $region3
    $region8: #{tpu_custom_call.1} parent=1 // loop_exit
      _
    %647 = vsyncpa [#allocation4], 1
    %s648 = scalar_lea.sflag [#allocation4], 1
    %649 = vsyncpa %s648, 1
    %650 = vsyncpa [#allocation6], 1

// kernel: tpu_custom_call.1
$region0: #{tpu_custom_call.1}
  #allocation0 [shape = 'u32[]', space=smem, size = 0x4, offset = 0x4, fixed_abs, tag = 'smem constant byte address 0x4 - core index']
  #allocation1 [shape = 'u32[144,128]{1,0:T(1,128)}', space=vmem, size = 0x12000, scoped, tag = 'internal scratch']
  #allocation2 [shape = 'f32[1,1]{1,0:T(1,128)S(6)}', space=smem, size = 0x200, scoped, tag = 'scoped memory for tpu_custom_call.1']
  %s0 = inlined_call_operand.<no memory space> [shape: f32[1,1], index: 0, kind: input, shape index: {}]
  %s1 = inlined_call_operand.hbm [shape: f32[64,64], index: 1, kind: input, shape index: {}]
  %s2 = inlined_call_operand.hbm [shape: f32[64,64], index: 2, kind: input, shape index: {}]
  %s3 = inlined_call_operand.vmem [shape: f32[64,1], index: 3, kind: output, shape index: {}]
  %s4 = sld [smem:[#allocation0]]
  $region53: #{tpu_custom_call.1} parent=0
    _
  %s6 = ssub.s32 1, %s4
  %s7 = scalar_select 0, %s6, %s4
  %8 = sst [smem:[#allocation2]] %s0
  $region1: #{tpu_custom_call.1} parent=0
    #allocation3 [shape = 'u8[32768]{0}', space=vmem, size = 0x8000, scoped, tag = 'input window, operand 1, single buffered']
    #allocation4 [shape = 's32[2]{0}', space=sflag, size = 0x8, scoped, tag = 'scoped memory for tpu_custom_call.1']
    #allocation5 [shape = 'u8[32768]{0}', space=vmem, size = 0x8000, scoped, tag = 'input window, operand 2, single buffered']
    #allocation6 [shape = 's32[1]{0}', space=sflag, size = 0x4, scoped, tag = 'scoped memory for tpu_custom_call.1']
    %9 = vsyncpa [#allocation4], 0
    %10 = vsyncpa [#allocation6], 0
    loop: start=0, step=1, limit=4
    $region2: #{tpu_custom_call.1} parent=1 // loop_pre_header
      _
    $region3: #{tpu_custom_call.1} parent=1 // loop_header
      %s12 = sphi 0, %s16
      %p13 = scmp.ge.s32.totalorder %s12, 4
      %s20 = sphi 0, %s20
      %s22 = sphi 0, %s20
      %s23 = sphi 0, %s22
      %s37 = sphi 0, %s23
      %s41 = sphi 0, %s41
      %s43 = sphi 0, %s41
      %s44 = sphi 0, %s43
      %s58 = sphi 0, %s44
      %s62 = sphi 0, %s62
      %s64 = sphi 0, %s62
      %s65 = sphi 0, %s64
      %s79 = sphi 0, %s65
      %s85 = sphi 0, %s87
      %s88 = sphi 0, %s85
      %s89 = sphi 0, %s88
      %s105 = sphi 0, %s89
    $region4: #{tpu_custom_call.1} parent=1 // loop_header_branch
      %15 = sbr.rel (%p13) target = $region8
    $region5: #{tpu_custom_call.1} parent=1 // loop_body
      %s17 = ssub.s32 %s12, 1
      %s18 = ssub.s32 %s12, 2
      %s19 = sadd.s32 %s12, 1
      %s21 = sadd.s32 %s20, 1
      %p24 = scmp.eq.s32.totalorder %s12, 1
      %p25 = scmp.ne.s32.totalorder %s20, %s22
      %p26 = scmp.eq.s32.totalorder %s12, 0
      %p27 = por %p25, %p26
      %p28 = scmp.ne.s32.totalorder %s20, %s22
      %p29 = scmp.eq.s32.totalorder %s17, 1
      %p30 = por %p28, %p29
      %p31 = scmp.ne.s32.totalorder %s22, %s23
      %p32 = scmp.eq.s32.totalorder %s17, 0
      %p33 = por %p31, %p32
      %p34 = scmp.ne.s32.totalorder %s22, %s23
      %p35 = scmp.eq.s32.totalorder %s18, 1
      %p36 = por %p34, %p35
      %p38 = scmp.ne.s32.totalorder %s23, %s37
      %p39 = scmp.eq.s32.totalorder %s18, 0
      %p40 = por %p38, %p39
      %s42 = sadd.s32 %s41, 1
      %p45 = scmp.eq.s32.totalorder %s12, 1
      %p46 = scmp.ne.s32.totalorder %s41, %s43
      %p47 = scmp.eq.s32.totalorder %s12, 0
      %p48 = por %p46, %p47
      %p49 = scmp.ne.s32.totalorder %s41, %s43
      %p50 = scmp.eq.s32.totalorder %s17, 1
      %p51 = por %p49, %p50
      %p52 = scmp.ne.s32.totalorder %s43, %s44
      %p53 = scmp.eq.s32.totalorder %s17, 0
      %p54 = por %p52, %p53
      %p55 = scmp.ne.s32.totalorder %s43, %s44
      %p56 = scmp.eq.s32.totalorder %s18, 1
      %p57 = por %p55, %p56
      %p59 = scmp.ne.s32.totalorder %s44, %s58
      %p60 = scmp.eq.s32.totalorder %s18, 0
      %p61 = por %p59, %p60
      %s63 = sadd.s32 %s62, 1
      %p66 = scmp.eq.s32.totalorder %s12, 1
      %p67 = scmp.ne.s32.totalorder %s62, %s64
      %p68 = scmp.eq.s32.totalorder %s12, 0
      %p69 = por %p67, %p68
      %p70 = scmp.ne.s32.totalorder %s62, %s64
      %p71 = scmp.eq.s32.totalorder %s17, 1
      %p72 = por %p70, %p71
      %p73 = scmp.ne.s32.totalorder %s64, %s65
      %p74 = scmp.eq.s32.totalorder %s17, 0
      %p75 = por %p73, %p74
      %p76 = scmp.ne.s32.totalorder %s64, %s65
      %p77 = scmp.eq.s32.totalorder %s18, 1
      %p78 = por %p76, %p77
      %p80 = scmp.ne.s32.totalorder %s65, %s79
      %p81 = scmp.eq.s32.totalorder %s18, 0
      %p82 = por %p80, %p81
      %s83 = ssub.s32 %s12, %s19
      %p84 = scmp.eq.s32.totalorder %s83, 0
      %s86 = sadd.s32 %s85, 1
      %s87 = scalar_select %p84, %s85, %s86
      %p90 = pneg %p84
      %p91 = scmp.eq.s32.totalorder %s12, 1
      %p92 = por %p90, %p91
      %p93 = scmp.ne.s32.totalorder %s85, %s88
      %p94 = scmp.eq.s32.totalorder %s12, 0
      %p95 = por %p93, %p94
      %p96 = scmp.ne.s32.totalorder %s85, %s88
      %p97 = scmp.eq.s32.totalorder %s17, 1
      %p98 = por %p96, %p97
      %p99 = scmp.ne.s32.totalorder %s88, %s89
      %p100 = scmp.eq.s32.totalorder %s17, 0
      %p101 = por %p99, %p100
      %p102 = scmp.ne.s32.totalorder %s88, %s89
      %p103 = scmp.eq.s32.totalorder %s18, 1
      %p104 = por %p102, %p103
      %p106 = scmp.ne.s32.totalorder %s89, %s105
      %p107 = scmp.eq.s32.totalorder %s18, 0
      %p108 = por %p106, %p107
      %p109 = scmp.le.s32.totalorder 1, %s12
      %p110 = scmp.lt.s32.totalorder %s12, 3
      %p111 = pnand %p109, %p110
      %p112 = pneg %p111
      // Predicated region
      $region9: #{tpu_custom_call.1} parent=5 // pred_check
        _
      $region10: #{tpu_custom_call.1} parent=5 // pred_check_branch
        %114 = sbr.rel (%p111) target = $region12
      $region11: #{tpu_custom_call.1} parent=5 // pred_region
        %s115 = ssub.s32 %s12, 1
        // Predicated region
        $region13: #{tpu_custom_call.1} parent=11 // pred_check
          %p116 = pneg %p33
        $region14: #{tpu_custom_call.1} parent=11 // pred_check_branch
          %118 = sbr.rel (%p116) target = $region16
        $region15: #{tpu_custom_call.1} parent=11 // pred_region
          _
        $region16: #{tpu_custom_call.1} parent=11 // pred_fallthru
          _
        // Predicated region
        $region17: #{tpu_custom_call.1} parent=11 // pred_check
          %p119 = pneg %p54
        $region18: #{tpu_custom_call.1} parent=11 // pred_check_branch
          %121 = sbr.rel (%p119) target = $region20
        $region19: #{tpu_custom_call.1} parent=11 // pred_region
          %s123 = ssub.s32 1024, 1024
          %124 = vsyncadd [#allocation4], %s123
          %s125 = sshll.u32 [#allocation3], 4
          %s126 = int_to_ptr.vmem [resolvable:$true] %s125
          %131 = dma.hbm_to_vmem [thread:$0]  %s1, 1024, %s126, [#allocation4], 128, 128, 8
        $region20: #{tpu_custom_call.1} parent=11 // pred_fallthru
          _
        // Predicated region
        $region21: #{tpu_custom_call.1} parent=11 // pred_check
          %p132 = pneg %p75
        $region22: #{tpu_custom_call.1} parent=11 // pred_check_branch
          %134 = sbr.rel (%p132) target = $region24
        $region23: #{tpu_custom_call.1} parent=11 // pred_region
          %s136 = ssub.s32 1024, 1024
          %137 = vsyncadd [#allocation6], %s136
          %s138 = sshll.u32 [#allocation5], 4
          %s139 = int_to_ptr.vmem [resolvable:$true] %s138
          %144 = dma.hbm_to_vmem [thread:$0]  %s2, 1024, %s139, [#allocation6], 128, 128, 8
        $region24: #{tpu_custom_call.1} parent=11 // pred_fallthru
          _
      $region12: #{tpu_custom_call.1} parent=5 // pred_fallthru
        _
      %p145 = scmp.lt.s32.totalorder %s12, 2
      // Predicated region
      $region25: #{tpu_custom_call.1} parent=5 // pred_check
        %p146 = pneg %p145
      $region26: #{tpu_custom_call.1} parent=5 // pred_check_branch
        %148 = sbr.rel (%p146) target = $region28
      $region27: #{tpu_custom_call.1} parent=5 // pred_region
        _
      $region28: #{tpu_custom_call.1} parent=5 // pred_fallthru
        _
      %p149 = scmp.le.s32.totalorder 1, %s12
      %p150 = scmp.lt.s32.totalorder %s12, 3
      %p151 = pnand %p149, %p150
      %p152 = pneg %p151
      // Predicated region
      $region29: #{tpu_custom_call.1} parent=5 // pred_check
        _
      $region30: #{tpu_custom_call.1} parent=5 // pred_check_branch
        %154 = sbr.rel (%p151) target = $region32
      $region31: #{tpu_custom_call.1} parent=5 // pred_region
        %s155 = ssub.s32 %s12, 1
        // Predicated region
        $region33: #{tpu_custom_call.1} parent=31 // pred_check
          %p156 = pneg %p54
        $region34: #{tpu_custom_call.1} parent=31 // pred_check_branch
          %158 = sbr.rel (%p156) target = $region36
        $region35: #{tpu_custom_call.1} parent=31 // pred_region
          %159 = dma.done [#allocation4], 1024
        $region36: #{tpu_custom_call.1} parent=31 // pred_fallthru
          _
        // Predicated region
        $region37: #{tpu_custom_call.1} parent=31 // pred_check
          %p160 = pneg %p75
        $region38: #{tpu_custom_call.1} parent=31 // pred_check_branch
          %162 = sbr.rel (%p160) target = $region40
        $region39: #{tpu_custom_call.1} parent=31 // pred_region
          %163 = dma.done [#allocation6], 1024
        $region40: #{tpu_custom_call.1} parent=31 // pred_fallthru
          _
        %p164 = pneg %p33
        %p165 = pneg %p30
        %p166 = pneg %p54
        %p167 = pneg %p51
        %p168 = pneg %p75
        %p169 = pneg %p72
        %p170 = pneg %p101
        %p171 = pneg %p98
        %s172 = smul.u32 4, %s17
        %p173 = scmp.lt.s32.totalorder %s172, 7
        %s174 = scalar_select %p173, %s172, 7
        %s175 = smul.addr %s174, 8
        %s176 = scalar_lea.vmem %s3, %s175
        %s177 = smul.u32 4, %s17
        %p178 = scmp.lt.s32.totalorder %s177, 7
        %s179 = scalar_select %p178, %s177, 7
        %s180 = smul.addr %s179, 8
        %s181 = scalar_lea.vmem %s3, %s180
        %s182 = smul.u32 4, %s17
        %s183 = smul.u32 %s17, 32
        %s184 = sld [smem:[#allocation2]]
        %v185 = vld [vmem:[#allocation3] sm:$0xff]
        %v186 = vld [vmem:[#allocation3 + $0x8] sm:$0xff]
        %v187 = vld [vmem:[#allocation3 + $0x10] sm:$0xff]
        %v188 = vld [vmem:[#allocation3 + $0x18] sm:$0xff]
        %v189 = vld [vmem:[#allocation3 + $0x20] sm:$0xff]
        %v190 = vld [vmem:[#allocation3 + $0x28] sm:$0xff]
        %v191 = vld [vmem:[#allocation3 + $0x30] sm:$0xff]
        %v192 = vld [vmem:[#allocation3 + $0x38] sm:$0xff]
        %v193 = vld [vmem:[#allocation5] sm:$0xff]
        %v194 = vld [vmem:[#allocation5 + $0x8] sm:$0xff]
        %v195 = vld [vmem:[#allocation5 + $0x10] sm:$0xff]
        %v196 = vld [vmem:[#allocation5 + $0x18] sm:$0xff]
        %v197 = vld [vmem:[#allocation5 + $0x20] sm:$0xff]
        %v198 = vld [vmem:[#allocation5 + $0x28] sm:$0xff]
        %v199 = vld [vmem:[#allocation5 + $0x30] sm:$0xff]
        %v200 = vld [vmem:[#allocation5 + $0x38] sm:$0xff]
        %s201 = scalar_lea.vmem [#allocation3], %s183
        %v202 = vld [vmem:[%s201] sm:$0xff]
        %v203 = vld [vmem:[%s201 + $0x8] sm:$0xff]
        %v204 = vld [vmem:[%s201 + $0x10] sm:$0xff]
        %v205 = vld [vmem:[%s201 + $0x18] sm:$0xff]
        %s206 = scalar_lea.vmem [#allocation5], %s183
        %v207 = vld [vmem:[%s206] sm:$0xff]
        %v208 = vld [vmem:[%s206 + $0x8] sm:$0xff]
        %v209 = vld [vmem:[%s206 + $0x10] sm:$0xff]
        %v210 = vld [vmem:[%s206 + $0x18] sm:$0xff]
        %v211 = vmul.f32 %v202, %v207
        %v212 = vmul.f32 %v203, %v208
        %v213 = vmul.f32 %v204, %v209
        %v214 = vmul.f32 %v205, %v210
        %vm215 = vcmask 523264
        %v216 = vsel %vm215, %v211, 0.0
        %217 = vadd.xlane.f32.xlu0 %v216
        %v218 = vpop.xlane.xlu0 %217
        %v219 = vsel %vm215, %v212, 0.0
        %220 = vadd.xlane.f32.xlu0 %v219
        %v221 = vpop.xlane.xlu0 %220
        %v222 = vsel %vm215, %v213, 0.0
        %223 = vadd.xlane.f32.xlu0 %v222
        %v224 = vpop.xlane.xlu0 %223
        %v225 = vsel %vm215, %v214, 0.0
        %226 = vadd.xlane.f32.xlu0 %v225
        %v227 = vpop.xlane.xlu0 %226
        %v228 = vstv %s184
        %v229 = vmul.f32 %v228, %v218
        %v230 = vmul.f32 %v228, %v221
        %v231 = vmul.f32 %v228, %v224
        %v232 = vmul.f32 %v228, %v227
        %v233 = vmul.f32 %v202, %v228
        %v234 = vmul.f32 %v203, %v228
        %v235 = vmul.f32 %v204, %v228
        %v236 = vmul.f32 %v205, %v228
        %v237 = vmul.f32 %v207, %v228
        %v238 = vmul.f32 %v208, %v228
        %v239 = vmul.f32 %v209, %v228
        %v240 = vmul.f32 %v210, %v228
        %v242 = vsel %vm215, %v233, 0
        %v245 = vsel %vm215, %v234, 0
        %v248 = vsel %vm215, %v235, 0
        %v251 = vsel %vm215, %v236, 0
        %v254 = vsel %vm215, %v193, 0
        %v257 = vsel %vm215, %v194, 0
        %v260 = vsel %vm215, %v195, 0
        %v263 = vsel %vm215, %v196, 0
        %v266 = vsel %vm215, %v197, 0
        %v269 = vsel %vm215, %v198, 0
        %v272 = vsel %vm215, %v199, 0
        %v275 = vsel %vm215, %v200, 0
        %277 = vmatprep.subr.mxu0 0.0
        %278 = vmatpush1.xpose.msra.mxu0 %v254
        %279 = vmatprep.subr.mxu0 0.0
        %280 = vmatpush1.xpose.msra.mxu0 %v257
        %281 = vmatprep.subr.mxu0 0.0
        %282 = vmatpush1.xpose.msra.mxu0 %v260
        %283 = vmatprep.subr.mxu0 0.0
        %284 = vmatpush1.xpose.msra.mxu0 %v263
        %285 = vmatprep.subr.mxu0 0.0
        %286 = vmatpush1.xpose.msra.mxu0 %v266
        %287 = vmatprep.subr.mxu0 0.0
        %288 = vmatpush1.xpose.msra.mxu0 %v269
        %289 = vmatprep.subr.mxu0 0.0
        %290 = vmatpush1.xpose.msra.mxu0 %v272
        %291 = vmatprep.subr.mxu0 0.0
        %292 = vmatpush1.xpose.msra.mxu0 %v275
        %293 = vmatprep.subr.mxu0 0.0
        %294 = vmatpush1.xpose.msra.mxu0 0.0
        %295 = vmatprep.subr.mxu0 0.0
        %296 = vmatpush1.xpose.msra.mxu0 0.0
        %297 = vmatprep.subr.mxu0 0.0
        %298 = vmatpush1.xpose.msra.mxu0 0.0
        %299 = vmatprep.subr.mxu0 0.0
        %300 = vmatpush1.xpose.msra.mxu0 0.0
        %301 = vmatprep.subr.mxu0 0.0
        %302 = vmatpush1.xpose.msra.mxu0 0.0
        %303 = vmatprep.subr.mxu0 0.0
        %304 = vmatpush1.xpose.msra.mxu0 0.0
        %305 = vmatprep.subr.mxu0 0.0
        %306 = vmatpush1.xpose.msra.mxu0 0.0
        %307 = vmatprep.subr.mxu0 0.0
        %308 = vmatpush1.xpose.msra.mxu0 0.0
        %309 = vmatprep.subr.mxu0 0.0
        %310 = vmatpush1.xpose.msra.mxu0 0.0
        %311 = vmatprep.subr.mxu0 0.0
        %312 = vmatpush1.xpose.msra.mxu0 0.0
        %313 = vmatprep.subr.mxu0 0.0
        %314 = vmatpush1.xpose.msra.mxu0 0.0
        %315 = vmatprep.subr.mxu0 0.0
        %316 = vmatpush1.xpose.msra.mxu0 0.0
        %317 = vmatprep.subr.mxu0 0.0
        %318 = vmatpush1.xpose.msra.mxu0 0.0
        %319 = vmatprep.subr.mxu0 0.0
        %320 = vmatpush1.xpose.msra.mxu0 0.0
        %321 = vmatprep.subr.mxu0 0.0
        %322 = vmatpush1.xpose.msra.mxu0 0.0
        %323 = vmatprep.subr.mxu0 0.0
        %324 = vmatpush1.xpose.msra.mxu0 0.0
        %325 = vmatprep.subr.mxu0 0.0
        %326 = vmatpush1.xpose.msra.mxu0 0.0
        %327 = vmatprep.subr.mxu0 0.0
        %328 = vmatpush1.xpose.msra.mxu0 0.0
        %329 = vmatprep.subr.mxu0 0.0
        %330 = vmatpush1.xpose.msra.mxu0 0.0
        %331 = vmatprep.subr.mxu0 0.0
        %332 = vmatpush1.xpose.msra.mxu0 0.0
        %333 = vmatprep.subr.mxu0 0.0
        %334 = vmatpush1.xpose.msra.mxu0 0.0
        %335 = vmatprep.subr.mxu0 0.0
        %336 = vmatpush1.xpose.msra.mxu0 0.0
        %337 = vmatprep.subr.mxu0 0.0
        %338 = vmatpush1.xpose.msra.mxu0 0.0
        %339 = vmatprep.subr.mxu0 0.0
        %340 = vmatpush1.xpose.msra.mxu0 0.0
        %341 = vmatprep.mubr.f32.mxu0 0.0
        %342 = vmatmul.mubr.f32.gmra.mrb[0].mxu0 %v242
        %v343 = vpop.f32.mrb[0].mxu0
        %v344 = vadd.f32 0.0, %v343
        %v345 = vpop.f32.mrb[0].mxu0
        %346 = vmatprep.mubr.f32.mxu0 0.0
        %347 = vmatmul.mubr.f32.gmra.mrb[0].mxu0 %v245
        %v348 = vpop.f32.mrb[0].mxu0
        %v349 = vadd.f32 0.0, %v348
        %v350 = vpop.f32.mrb[0].mxu0
        %351 = vmatprep.mubr.f32.mxu0 0.0
        %352 = vmatmul.mubr.f32.gmra.mrb[0].mxu0 %v248
        %v353 = vpop.f32.mrb[0].mxu0
        %v354 = vadd.f32 0.0, %v353
        %v355 = vpop.f32.mrb[0].mxu0
        %356 = vmatprep.mubr.f32.mxu0 0.0
        %357 = vmatmul.mubr.f32.gmra.mrb[0].mxu0 %v251
        %v358 = vpop.f32.mrb[0].mxu0
        %v359 = vadd.f32 0.0, %v358
        %v360 = vpop.f32.mrb[0].mxu0
        %361 = vdwg.mxu0
        %v363 = vsel %vm215, %v237, 0
        %v366 = vsel %vm215, %v238, 0
        %v369 = vsel %vm215, %v239, 0
        %v372 = vsel %vm215, %v240, 0
        %v375 = vsel %vm215, %v185, 0
        %v378 = vsel %vm215, %v186, 0
        %v381 = vsel %vm215, %v187, 0
        %v384 = vsel %vm215, %v188, 0
        %v387 = vsel %vm215, %v189, 0
        %v390 = vsel %vm215, %v190, 0
        %v393 = vsel %vm215, %v191, 0
        %v396 = vsel %vm215, %v192, 0
        %398 = vmatprep.subr.mxu0 0.0
        %399 = vmatpush1.xpose.msra.mxu0 %v375
        %400 = vmatprep.subr.mxu0 0.0
        %401 = vmatpush1.xpose.msra.mxu0 %v378
        %402 = vmatprep.subr.mxu0 0.0
        %403 = vmatpush1.xpose.msra.mxu0 %v381
        %404 = vmatprep.subr.mxu0 0.0
        %405 = vmatpush1.xpose.msra.mxu0 %v384
        %406 = vmatprep.subr.mxu0 0.0
        %407 = vmatpush1.xpose.msra.mxu0 %v387
        %408 = vmatprep.subr.mxu0 0.0
        %409 = vmatpush1.xpose.msra.mxu0 %v390
        %410 = vmatprep.subr.mxu0 0.0
        %411 = vmatpush1.xpose.msra.mxu0 %v393
        %412 = vmatprep.subr.mxu0 0.0
        %413 = vmatpush1.xpose.msra.mxu0 %v396
        %414 = vmatprep.subr.mxu0 0.0
        %415 = vmatpush1.xpose.msra.mxu0 0.0
        %416 = vmatprep.subr.mxu0 0.0
        %417 = vmatpush1.xpose.msra.mxu0 0.0
        %418 = vmatprep.subr.mxu0 0.0
        %419 = vmatpush1.xpose.msra.mxu0 0.0
        %420 = vmatprep.subr.mxu0 0.0
        %421 = vmatpush1.xpose.msra.mxu0 0.0
        %422 = vmatprep.subr.mxu0 0.0
        %423 = vmatpush1.xpose.msra.mxu0 0.0
        %424 = vmatprep.subr.mxu0 0.0
        %425 = vmatpush1.xpose.msra.mxu0 0.0
        %426 = vmatprep.subr.mxu0 0.0
        %427 = vmatpush1.xpose.msra.mxu0 0.0
        %428 = vmatprep.subr.mxu0 0.0
        %429 = vmatpush1.xpose.msra.mxu0 0.0
        %430 = vmatprep.subr.mxu0 0.0
        %431 = vmatpush1.xpose.msra.mxu0 0.0
        %432 = vmatprep.subr.mxu0 0.0
        %433 = vmatpush1.xpose.msra.mxu0 0.0
        %434 = vmatprep.subr.mxu0 0.0
        %435 = vmatpush1.xpose.msra.mxu0 0.0
        %436 = vmatprep.subr.mxu0 0.0
        %437 = vmatpush1.xpose.msra.mxu0 0.0
        %438 = vmatprep.subr.mxu0 0.0
        %439 = vmatpush1.xpose.msra.mxu0 0.0
        %440 = vmatprep.subr.mxu0 0.0
        %441 = vmatpush1.xpose.msra.mxu0 0.0
        %442 = vmatprep.subr.mxu0 0.0
        %443 = vmatpush1.xpose.msra.mxu0 0.0
        %444 = vmatprep.subr.mxu0 0.0
        %445 = vmatpush1.xpose.msra.mxu0 0.0
        %446 = vmatprep.subr.mxu0 0.0
        %447 = vmatpush1.xpose.msra.mxu0 0.0
        %448 = vmatprep.subr.mxu0 0.0
        %449 = vmatpush1.xpose.msra.mxu0 0.0
        %450 = vmatprep.subr.mxu0 0.0
        %451 = vmatpush1.xpose.msra.mxu0 0.0
        %452 = vmatprep.subr.mxu0 0.0
        %453 = vmatpush1.xpose.msra.mxu0 0.0
        %454 = vmatprep.subr.mxu0 0.0
        %455 = vmatpush1.xpose.msra.mxu0 0.0
        %456 = vmatprep.subr.mxu0 0.0
        %457 = vmatpush1.xpose.msra.mxu0 0.0
        %458 = vmatprep.subr.mxu0 0.0
        %459 = vmatpush1.xpose.msra.mxu0 0.0
        %460 = vmatprep.subr.mxu0 0.0
        %461 = vmatpush1.xpose.msra.mxu0 0.0
        %462 = vmatprep.mubr.f32.mxu0 0.0
        %463 = vmatmul.mubr.f32.gmra.mrb[0].mxu0 %v363
        %v464 = vpop.f32.mrb[0].mxu0
        %v465 = vadd.f32 0.0, %v464
        %v466 = vpop.f32.mrb[0].mxu0
        %467 = vmatprep.mubr.f32.mxu0 0.0
        %468 = vmatmul.mubr.f32.gmra.mrb[0].mxu0 %v366
        %v469 = vpop.f32.mrb[0].mxu0
        %v470 = vadd.f32 0.0, %v469
        %v471 = vpop.f32.mrb[0].mxu0
        %472 = vmatprep.mubr.f32.mxu0 0.0
        %473 = vmatmul.mubr.f32.gmra.mrb[0].mxu0 %v369
        %v474 = vpop.f32.mrb[0].mxu0
        %v475 = vadd.f32 0.0, %v474
        %v476 = vpop.f32.mrb[0].mxu0
        %477 = vmatprep.mubr.f32.mxu0 0.0
        %478 = vmatmul.mubr.f32.gmra.mrb[0].mxu0 %v372
        %v479 = vpop.f32.mrb[0].mxu0
        %v480 = vadd.f32 0.0, %v479
        %v481 = vpop.f32.mrb[0].mxu0
        %482 = vdwg.mxu0
        %v483 = vlaneseq
        %v484 = vand.u32 %v483, 127
        %vm485 = vcmp.lt.s32.totalorder %v484, 48
        %v486 = vsel %vm485, %v344, -inf
        %v487 = vsel %vm485, %v349, -inf
        %v488 = vsel %vm485, %v354, -inf
        %v489 = vsel %vm485, %v359, -inf
        %v490 = vsel %vm215, %v486, -inf
        %491 = vmax.xlane.f32.xlu0 %v490
        %v492 = vpop.xlane.xlu0 %491
        %v493 = vsel %vm215, %v487, -inf
        %494 = vmax.xlane.f32.xlu0 %v493
        %v495 = vpop.xlane.xlu0 %494
        %v496 = vsel %vm215, %v488, -inf
        %497 = vmax.xlane.f32.xlu0 %v496
        %v498 = vpop.xlane.xlu0 %497
        %v499 = vsel %vm215, %v489, -inf
        %500 = vmax.xlane.f32.xlu0 %v499
        %v501 = vpop.xlane.xlu0 %500
        %v502 = vsub.f32 %v486, %v492
        %v503 = vsub.f32 %v487, %v495
        %v504 = vsub.f32 %v488, %v498
        %v505 = vsub.f32 %v489, %v501
        %v506 = vmul.f32 %v502, 1.442695
        %v507 = vpow.pop %v506
        %v508 = vmul.f32 %v503, 1.442695
        %v509 = vpow.pop %v508
        %v510 = vmul.f32 %v504, 1.442695
        %v511 = vpow.pop %v510
        %v512 = vmul.f32 %v505, 1.442695
        %v513 = vpow.pop %v512
        %v514 = vsel %vm215, %v507, 0.0
        %515 = vadd.xlane.f32.xlu0 %v514
        %v516 = vpop.xlane.xlu0 %515
        %v517 = vsel %vm215, %v509, 0.0
        %518 = vadd.xlane.f32.xlu0 %v517
        %v519 = vpop.xlane.xlu0 %518
        %v520 = vsel %vm215, %v511, 0.0
        %521 = vadd.xlane.f32.xlu0 %v520
        %v522 = vpop.xlane.xlu0 %521
        %v523 = vsel %vm215, %v513, 0.0
        %524 = vadd.xlane.f32.xlu0 %v523
        %v525 = vpop.xlane.xlu0 %524
        %v526 = vlog2.pop %v516
        %v527 = vmul.f32 %v526, 0.6931472
        %v528 = vlog2.pop %v519
        %v529 = vmul.f32 %v528, 0.6931472
        %v530 = vlog2.pop %v522
        %v531 = vmul.f32 %v530, 0.6931472
        %v532 = vlog2.pop %v525
        %v533 = vmul.f32 %v532, 0.6931472
        %v534 = vadd.f32 %v527, %v492
        %v535 = vadd.f32 %v529, %v495
        %v536 = vadd.f32 %v531, %v498
        %v537 = vadd.f32 %v533, %v501
        %v538 = vsel %vm485, %v465, -inf
        %v539 = vsel %vm485, %v470, -inf
        %v540 = vsel %vm485, %v475, -inf
        %v541 = vsel %vm485, %v480, -inf
        %v542 = vsel %vm215, %v538, -inf
        %543 = vmax.xlane.f32.xlu0 %v542
        %v544 = vpop.xlane.xlu0 %543
        %v545 = vsel %vm215, %v539, -inf
        %546 = vmax.xlane.f32.xlu0 %v545
        %v547 = vpop.xlane.xlu0 %546
        %v548 = vsel %vm215, %v540, -inf
        %549 = vmax.xlane.f32.xlu0 %v548
        %v550 = vpop.xlane.xlu0 %549
        %v551 = vsel %vm215, %v541, -inf
        %552 = vmax.xlane.f32.xlu0 %v551
        %v553 = vpop.xlane.xlu0 %552
        %v554 = vsub.f32 %v538, %v544
        %v555 = vsub.f32 %v539, %v547
        %v556 = vsub.f32 %v540, %v550
        %v557 = vsub.f32 %v541, %v553
        %v558 = vmul.f32 %v554, 1.442695
        %v559 = vpow.pop %v558
        %v560 = vmul.f32 %v555, 1.442695
        %v561 = vpow.pop %v560
        %v562 = vmul.f32 %v556, 1.442695
        %v563 = vpow.pop %v562
        %v564 = vmul.f32 %v557, 1.442695
        %v565 = vpow.pop %v564
        %v566 = vsel %vm215, %v559, 0.0
        %567 = vadd.xlane.f32.xlu0 %v566
        %v568 = vpop.xlane.xlu0 %567
        %v569 = vsel %vm215, %v561, 0.0
        %570 = vadd.xlane.f32.xlu0 %v569
        %v571 = vpop.xlane.xlu0 %570
        %v572 = vsel %vm215, %v563, 0.0
        %573 = vadd.xlane.f32.xlu0 %v572
        %v574 = vpop.xlane.xlu0 %573
        %v575 = vsel %vm215, %v565, 0.0
        %576 = vadd.xlane.f32.xlu0 %v575
        %v577 = vpop.xlane.xlu0 %576
        %v578 = vlog2.pop %v568
        %v579 = vmul.f32 %v578, 0.6931472
        %v580 = vlog2.pop %v571
        %v581 = vmul.f32 %v580, 0.6931472
        %v582 = vlog2.pop %v574
        %v583 = vmul.f32 %v582, 0.6931472
        %v584 = vlog2.pop %v577
        %v585 = vmul.f32 %v584, 0.6931472
        %v586 = vadd.f32 %v579, %v544
        %v587 = vadd.f32 %v581, %v547
        %v588 = vadd.f32 %v583, %v550
        %v589 = vadd.f32 %v585, %v553
        %v590 = vadd.f32 %v534, %v586
        %v591 = vadd.f32 %v535, %v587
        %v592 = vadd.f32 %v536, %v588
        %v593 = vadd.f32 %v537, %v589
        %v594 = vmul.f32 %v590, 0.5
        %v595 = vmul.f32 %v591, 0.5
        %v596 = vmul.f32 %v592, 0.5
        %v597 = vmul.f32 %v593, 0.5
        %v598 = vsub.f32 %v594, %v229
        %v599 = vsub.f32 %v595, %v230
        %v600 = vsub.f32 %v596, %v231
        %v601 = vsub.f32 %v597, %v232
        %v602 = vlaneseq
        %v603 = vshrl.u32 %v602, 7
        %v604 = vadd.s32 %v603, 8
        %v605 = vadd.s32 %v603, 16
        %v606 = vadd.s32 %v603, 24
        %v607 = vstv %s183
        %v608 = vadd.s32 %v603, %v607
        %v609 = vadd.s32 %v604, %v607
        %v610 = vadd.s32 %v605, %v607
        %v611 = vadd.s32 %v606, %v607
        %vm612 = vcmp.lt.s32.totalorder %v608, 48
        %vm613 = vcmp.lt.s32.totalorder %v609, 48
        %vm614 = vcmp.lt.s32.totalorder %v610, 48
        %vm615 = vcmp.lt.s32.totalorder %v611, 48
        %v616 = vsel %vm612, %v598, 0.0
        %v617 = vsel %vm613, %v599, 0.0
        %v618 = vsel %vm614, %v600, 0.0
        %v619 = vsel %vm615, %v601, 0.0
        %vm620 = vcmask 7168
        %621 = vst.msk [vmem:[%s181] sm:$0xff] %vm620, %v616
        %622 = vst.msk [vmem:[%s181 + $0x8] sm:$0xff] %vm620, %v617
        %623 = vst.msk [vmem:[%s181 + $0x10] sm:$0xff] %vm620, %v618
        %624 = vst.msk [vmem:[%s181 + $0x18] sm:$0xff] %vm620, %v619
        %s625 = smul.u32 4, %s17
        %p626 = scmp.lt.s32.totalorder %s625, 7
        %s627 = scalar_select %p626, %s625, 7
        %s628 = smul.addr %s627, 8
        %s629 = scalar_lea.vmem %s3, %s628
        // Predicated region
        $region41: #{tpu_custom_call.1} parent=31 // pred_check
          %p630 = pneg %p98
        $region42: #{tpu_custom_call.1} parent=31 // pred_check_branch
          %632 = sbr.rel (%p630) target = $region44
        $region43: #{tpu_custom_call.1} parent=31 // pred_region
          %s633 = smul.u32 4, %s17
        $region44: #{tpu_custom_call.1} parent=31 // pred_fallthru
          _
      $region32: #{tpu_custom_call.1} parent=5 // pred_fallthru
        _
      %p634 = scmp.le.s32.totalorder 2, %s12
      // Predicated region
      $region45: #{tpu_custom_call.1} parent=5 // pred_check
        %p635 = pneg %p634
      $region46: #{tpu_custom_call.1} parent=5 // pred_check_branch
        %637 = sbr.rel (%p635) target = $region48
      $region47: #{tpu_custom_call.1} parent=5 // pred_region
        %s638 = ssub.s32 %s12, 2
        // Predicated region
        $region49: #{tpu_custom_call.1} parent=47 // pred_check
          %p639 = pneg %p104
        $region50: #{tpu_custom_call.1} parent=47 // pred_check_branch
          %641 = sbr.rel (%p639) target = $region52
        $region51: #{tpu_custom_call.1} parent=47 // pred_region
          %s642 = smul.u32 4, %s18
          %p643 = scmp.lt.s32.totalorder %s642, 7
          %s644 = scalar_select %p643, %s642, 7
          %s645 = smul.addr %s644, 8
          %s646 = scalar_lea.vmem %s3, %s645
        $region52: #{tpu_custom_call.1} parent=47 // pred_fallthru
          _
      $region48: #{tpu_custom_call.1} parent=5 // pred_fallthru
        _
    $region6: #{tpu_custom_call.1} parent=1 // loop_footer
      %s16 = sadd.s32 1, %s12
    $region7: #{tpu_custom_call.1} parent=1 // loop_footer_branch
      %11 = sbr.rel target = $region3
    $region8: #{tpu_custom_call.1} parent=1 // loop_exit
      _
    %647 = vsyncpa [#allocation4], 1
    %s648 = scalar_lea.sflag [#allocation4], 1
    %649 = vsyncpa %s648, 1
    %650 = vsyncpa [#allocation6], 1

</llo_original>
